<compile_context>
chip_gen: v6e
topology: v6e:2x2x1
jax: 0.10.0
libtpu: 0.0.40
codegen_flags: <defaults>
</compile_context>

<pallas_src>
import jax
import jax.numpy as jnp
from jax.experimental import pallas as pl
from jax.experimental.pallas import tpu as pltpu

SIGMAS = (0.5, 1.0, 2.0, 4.0, 8.0)
FILTER_SIZE = int(4 * SIGMAS[-1] + 1)    # 33
PAD = int(2 * SIGMAS[-1])                # 16
DATA_RANGE = 1.0
C1 = (0.01 * DATA_RANGE) ** 2
C2 = (0.03 * DATA_RANGE) ** 2
ALPHA = 0.025
COMPENSATION = 200.0
NUM_SIGMAS = len(SIGMAS)
NUM_FILTERS = 3 * NUM_SIGMAS             # 15 grouped-conv output channels

# PyTorch grouped conv (groups=3, 15 filters): output channel o reads input
# channel o // 5 with filter gauss(sigma[o // 3]).  Deduplicated to the 7
# distinct (channel, multiplicity) entries, grouped by sigma index:
PAIRS = (
    (0, ((0, 3),)),            # filters 0,1,2
    (1, ((0, 2), (1, 1))),     # filters 3,4,5
    (2, ((1, 3),)),            # filters 6,7,8
    (3, ((1, 1), (2, 2))),     # filters 9,10,11
    (4, ((2, 3),)),            # filters 12,13,14 (also feed lM and the L1 conv)
)


def _gauss_1d(size, sigma):
    # matches torch _fspecial_gauss_1d
    coords = jnp.arange(size, dtype=jnp.float32) - (size // 2)
    g = jnp.exp(-(coords ** 2) / (2.0 * sigma ** 2))
    return g / jnp.sum(g)


def _band_matrix(n, g1d):
    # A[i, m] = g1d[m - i + PAD] when the tap lands inside the 33-tap filter,
    # else 0.  Zero padding of the conv is implicit (out-of-range taps dropped).
    i = jnp.arange(n)[:, None]
    m = jnp.arange(n)[None, :]
    idx = m - i + PAD
    valid = (idx >= 0) & (idx < FILTER_SIZE)
    return jnp.where(valid, g1d[jnp.clip(idx, 0, FILTER_SIZE - 1)], 0.0).astype(jnp.float32)


def _ms_ssim_l1_kernel(x_ref, y_ref, ah_ref, awt_ref, out_ref):
    # x_ref, y_ref : (1, 3, H, W) f32   one batch element per grid step
    # ah_ref       : (5, H, H)   bf16   row-conv band matrices (per sigma)
    # awt_ref      : (5, W, W)   bf16   col-conv band matrices, pre-transposed
    # out_ref      : (1, 1, 1)   f32    sum over (H, W) of compensated loss_mix
    x = x_ref[0]            # (3, H, W) f32
    y = y_ref[0]
    H, W = x.shape[1], x.shape[2]

    # Per-channel planes computed once (each channel is reused by 2-3 sigmas).
    xs = [x[c] for c in range(3)]
    ys = [y[c] for c in range(3)]
    xxs = [xc * xc for xc in xs]
    yys = [yc * yc for yc in ys]
    xys = [xc * yc for xc, yc in zip(xs, ys)]

    def batched_conv(planes, s):
        # Separable gaussian conv (sigma index s) on all planes at once:
        #   left conv : A_h[s] @ (H, n*W)   (planes lane-concatenated)
        #   right conv: (n*H, W) @ A_wT[s]  (planes sublane-stacked)
        # bf16 operands, f32 accumulation; returns list of (H, W) f32 planes.
        n = len(planes)
        xcat = jnp.concatenate(planes, axis=1).astype(jnp.bfloat16)           # (H, n*W)
        t = jnp.dot(ah_ref[s], xcat, preferred_element_type=jnp.float32)      # (H, n*W) f32
        tsub = jnp.concatenate([t[:, i * W:(i + 1) * W] for i in range(n)],
                               axis=0).astype(jnp.bfloat16)                   # (n*H, W)
        r = jnp.dot(tsub, awt_ref[s], preferred_element_type=jnp.float32)     # (n*H, W) f32
        return [r[i * H:(i + 1) * H, :] for i in range(n)]

    PIcs = None
    lM = None
    gl1 = None
    for s, chans in PAIRS:
        planes = []
        for c, _ in chans:
            planes += [xs[c], ys[c], xxs[c], yys[c], xys[c]]
        n_ssim = len(planes)
        if s == NUM_SIGMAS - 1:
            # Fold the gaussian-weighted L1 planes (same sigma=8 filter) into
            # the same batched matmuls.
            planes += [jnp.abs(xs[c] - ys[c]) for c in range(3)]

        outs = batched_conv(planes, s)

        for i, (c, mult) in enumerate(chans):
            mux, muy, cxx, cyy, cxy = outs[5 * i:5 * i + 5]
            mux2 = mux * mux
            muy2 = muy * muy
            muxy = mux * muy
            sigmax2 = cxx - mux2
            sigmay2 = cyy - muy2
            sigmaxy = cxy - muxy
            cs = (2.0 * sigmaxy + C2) * pl.reciprocal(sigmax2 + sigmay2 + C2,
                                                      approx=True)
            cs_pow = cs
            if mult >= 2:
                cs_pow = cs_pow * cs
            if mult == 3:
                cs_pow = cs_pow * cs
            PIcs = cs_pow if PIcs is None else PIcs * cs_pow

            if s == NUM_SIGMAS - 1 and c == 2:
                # lM = l[:, -1] * l[:, -2] * l[:, -3]; the last 3 filters are
                # identical (channel 2, sigma 8), so lM = l^3.
                l = (2.0 * muxy + C1) * pl.reciprocal(mux2 + muy2 + C1,
                                                      approx=True)
                lM = l * l * l

        if s == NUM_SIGMAS - 1:
            l1a, l1b, l1c = outs[n_ssim:n_ssim + 3]
            gl1 = (l1a + l1b + l1c) * (1.0 / 3.0)

    loss_ms_ssim = 1.0 - lM * PIcs
    loss_mix = ALPHA * loss_ms_ssim + ((1.0 - ALPHA) / DATA_RANGE) * gl1

    # In-kernel spatial reduction -> per-batch scalar (no (B,H,W) writeback).
    # COMPENSATION is folded in at the (1,1) scalar level.
    row = jnp.sum(loss_mix, axis=1, keepdims=True)                  # (H, 1)
    out_ref[0] = COMPENSATION * jnp.sum(row, axis=0, keepdims=True)  # (1, 1)


def ms_ssim_l1_loss(x, y):
    B, C, H, W = x.shape
    assert C == 3, "MS_SSIM_L1_LOSS requires 3-channel inputs (groups=3)."
    g1ds = [_gauss_1d(FILTER_SIZE, s) for s in SIGMAS]
    a_h = jnp.stack([_band_matrix(H, g) for g in g1ds]).astype(jnp.bfloat16)      # (5, H, H)
    a_wt = jnp.stack([_band_matrix(W, g).T for g in g1ds]).astype(jnp.bfloat16)   # (5, W, W)

    per_batch = pl.pallas_call(
        _ms_ssim_l1_kernel,
        out_shape=jax.ShapeDtypeStruct((B, 1, 1), jnp.float32),
        grid_spec=pltpu.PrefetchScalarGridSpec(
            num_scalar_prefetch=0,
            grid=(B,),
            in_specs=[
                pl.BlockSpec((1, C, H, W), lambda b: (b, 0, 0, 0)),
                pl.BlockSpec((1, C, H, W), lambda b: (b, 0, 0, 0)),
                pl.BlockSpec((NUM_SIGMAS, H, H), lambda b: (0, 0, 0)),
                pl.BlockSpec((NUM_SIGMAS, W, W), lambda b: (0, 0, 0)),
            ],
            out_specs=pl.BlockSpec((1, 1, 1), lambda b: (b, 0, 0)),
        ),
        compiler_params=pltpu.CompilerParams(
            dimension_semantics=("parallel",)),
    )(x.astype(jnp.float32), y.astype(jnp.float32), a_h, a_wt)

    # Final scalar reduction (glue): mean over (B, H, W) from B partial sums.
    return jnp.sum(per_batch) / (B * H * W)


# ----------------------------------------------------------------------------
# Independent pure-JAX/XLA reference that mirrors the PyTorch forward exactly
# (true grouped conv2d, f32 HIGHEST precision).  Used only for a sanity check
# of the bf16-matmul kernel.
# ----------------------------------------------------------------------------
def _gauss_2d(size, sigma):
    g = _gauss_1d(size, sigma)
    return g[:, None] * g[None, :]


def _grouped_conv(img, filt):
    return jax.lax.conv_general_dilated(
        img, filt, window_strides=(1, 1),
        padding=((PAD, PAD), (PAD, PAD)),
        dimension_numbers=("NCHW", "OIHW", "NCHW"),
        feature_group_count=3,
        precision=jax.lax.Precision.HIGHEST)


def _reference_loss(x, y):
    g_masks = jnp.stack(
        [_gauss_2d(FILTER_SIZE, SIGMAS[o // 3]) for o in range(NUM_FILTERS)]
    )[:, None]                                                   # (15, 1, 33, 33)
    conv = lambda img: _grouped_conv(img, g_masks)
    mux, muy = conv(x), conv(y)
    mux2, muy2, muxy = mux * mux, muy * muy, mux * muy
    sigmax2 = conv(x * x) - mux2
    sigmay2 = conv(y * y) - muy2
    sigmaxy = conv(x * y) - muxy
    l = (2 * muxy + C1) / (mux2 + muy2 + C1)
    cs = (2 * sigmaxy + C2) / (sigmax2 + sigmay2 + C2)
    lM = l[:, -1] * l[:, -2] * l[:, -3]
    PIcs = jnp.prod(cs, axis=1)
    loss_ms_ssim = 1 - lM * PIcs
    gaussian_l1 = jnp.mean(_grouped_conv(jnp.abs(x - y), g_masks[-3:]), axis=1)
    loss_mix = ALPHA * loss_ms_ssim + (1 - ALPHA) * gaussian_l1 / DATA_RANGE
    return COMPENSATION * jnp.mean(loss_mix)


if __name__ == "__main__":
    key = jax.random.PRNGKey(0)
    kx, ky = jax.random.split(key)
    B, C, H, W = 2, 3, 16, 16
    x = jax.random.uniform(kx, (B, C, H, W), dtype=jnp.float32)   # data_range = 1.0
    y = jax.random.uniform(ky, (B, C, H, W), dtype=jnp.float32)

    loss = jax.jit(ms_ssim_l1_loss)(x, y)
    jax.block_until_ready(loss)
    assert loss.shape == () and bool(jnp.isfinite(loss))

    ref = _reference_loss(x, y)
    rel = abs(float(loss) - float(ref)) / max(abs(float(ref)), 1e-6)
    assert rel < 5e-2, f"kernel {float(loss)} vs reference {float(ref)} (rel={rel})"

    print("KERNEL_OK")
</pallas_src>

<mosaic_0001>
module attributes {stable_mosaic.version = 11 : i64} {
  func.func @_ms_ssim_l1_kernel(%arg0: i32, %arg1: memref<1x3x16x16xf32, #tpu.memory_space<vmem>>, %arg2: memref<1x3x16x16xf32, #tpu.memory_space<vmem>>, %arg3: memref<5x16x16xbf16, #tpu.memory_space<vmem>>, %arg4: memref<5x16x16xbf16, #tpu.memory_space<vmem>>, %arg5: memref<1x1x1xf32, #tpu.memory_space<vmem>>) attributes {dimension_semantics = [#tpu.dimension_semantics<parallel>], iteration_bounds = array<i64: 2>, scalar_prefetch = 0 : i64, scratch_operands = 0 : i64, tpu.core_type = #tpu.core_type<tc>, window_params = [{transform_indices = @transform_0, window_bounds = array<i64: 1, 3, 16, 16>}, {transform_indices = @transform_1, window_bounds = array<i64: 1, 3, 16, 16>}, {pipeline_mode = #tpu.pipeline_mode<synchronous>, transform_indices = @transform_2, window_bounds = array<i64: 5, 16, 16>}, {pipeline_mode = #tpu.pipeline_mode<synchronous>, transform_indices = @transform_3, window_bounds = array<i64: 5, 16, 16>}, {transform_indices = @transform_4, window_bounds = array<i64: 1, 1, 1>}]} {
    %c0 = arith.constant 0 : index
    %c0_0 = arith.constant 0 : index
    %c0_1 = arith.constant 0 : index
    %c0_2 = arith.constant 0 : index
    %0 = vector.load %arg1[%c0, %c0_0, %c0_1, %c0_2] : memref<1x3x16x16xf32, #tpu.memory_space<vmem>>, vector<1x3x16x16xf32>
    %1 = vector.shape_cast %0 : vector<1x3x16x16xf32> to vector<3x16x16xf32>
    %c0_3 = arith.constant 0 : index
    %c0_4 = arith.constant 0 : index
    %c0_5 = arith.constant 0 : index
    %c0_6 = arith.constant 0 : index
    %2 = vector.load %arg2[%c0_3, %c0_4, %c0_5, %c0_6] : memref<1x3x16x16xf32, #tpu.memory_space<vmem>>, vector<1x3x16x16xf32>
    %3 = vector.shape_cast %2 : vector<1x3x16x16xf32> to vector<3x16x16xf32>
    %4 = vector.extract_strided_slice %1 {offsets = [0, 0, 0], sizes = [1, 16, 16], strides = [1, 1, 1]} : vector<3x16x16xf32> to vector<1x16x16xf32>
    %5 = vector.shape_cast %4 : vector<1x16x16xf32> to vector<16x16xf32>
    %6 = vector.extract_strided_slice %1 {offsets = [1, 0, 0], sizes = [1, 16, 16], strides = [1, 1, 1]} : vector<3x16x16xf32> to vector<1x16x16xf32>
    %7 = vector.shape_cast %6 : vector<1x16x16xf32> to vector<16x16xf32>
    %8 = vector.extract_strided_slice %1 {offsets = [2, 0, 0], sizes = [1, 16, 16], strides = [1, 1, 1]} : vector<3x16x16xf32> to vector<1x16x16xf32>
    %9 = vector.shape_cast %8 : vector<1x16x16xf32> to vector<16x16xf32>
    %10 = vector.extract_strided_slice %3 {offsets = [0, 0, 0], sizes = [1, 16, 16], strides = [1, 1, 1]} : vector<3x16x16xf32> to vector<1x16x16xf32>
    %11 = vector.shape_cast %10 : vector<1x16x16xf32> to vector<16x16xf32>
    %12 = vector.extract_strided_slice %3 {offsets = [1, 0, 0], sizes = [1, 16, 16], strides = [1, 1, 1]} : vector<3x16x16xf32> to vector<1x16x16xf32>
    %13 = vector.shape_cast %12 : vector<1x16x16xf32> to vector<16x16xf32>
    %14 = vector.extract_strided_slice %3 {offsets = [2, 0, 0], sizes = [1, 16, 16], strides = [1, 1, 1]} : vector<3x16x16xf32> to vector<1x16x16xf32>
    %15 = vector.shape_cast %14 : vector<1x16x16xf32> to vector<16x16xf32>
    %16 = arith.mulf %5, %5 : vector<16x16xf32>
    %17 = arith.mulf %7, %7 : vector<16x16xf32>
    %18 = arith.mulf %9, %9 : vector<16x16xf32>
    %19 = arith.mulf %11, %11 : vector<16x16xf32>
    %20 = arith.mulf %13, %13 : vector<16x16xf32>
    %21 = arith.mulf %15, %15 : vector<16x16xf32>
    %22 = arith.mulf %5, %11 : vector<16x16xf32>
    %23 = arith.mulf %7, %13 : vector<16x16xf32>
    %24 = arith.mulf %9, %15 : vector<16x16xf32>
    %25 = tpu.concatenate %5, %11, %16, %19, %22 in 1 : vector<16x16xf32>, vector<16x16xf32>, vector<16x16xf32>, vector<16x16xf32>, vector<16x16xf32> -> vector<16x80xf32>
    %26 = arith.truncf %25 : vector<16x80xf32> to vector<16x80xbf16>
    %c0_7 = arith.constant 0 : index
    %c0_8 = arith.constant 0 : index
    %c0_9 = arith.constant 0 : index
    %27 = vector.load %arg3[%c0_7, %c0_8, %c0_9] : memref<5x16x16xbf16, #tpu.memory_space<vmem>>, vector<1x16x16xbf16>
    %28 = vector.shape_cast %27 : vector<1x16x16xbf16> to vector<16x16xbf16>
    %cst = arith.constant dense<0.000000e+00> : vector<16x80xf32>
    %29 = tpu.matmul %28, %26, %cst {dimension_numbers = #tpu.dot_dimension_numbers<[1], [0], [0], [1], [0, 0, 1, 1], [], []>} : vector<16x16xbf16>, vector<16x80xbf16>, vector<16x80xf32> -> vector<16x80xf32>
    %30 = vector.extract_strided_slice %29 {offsets = [0, 0], sizes = [16, 16], strides = [1, 1]} : vector<16x80xf32> to vector<16x16xf32>
    %31 = vector.extract_strided_slice %29 {offsets = [0, 16], sizes = [16, 16], strides = [1, 1]} : vector<16x80xf32> to vector<16x16xf32>
    %32 = vector.extract_strided_slice %29 {offsets = [0, 32], sizes = [16, 16], strides = [1, 1]} : vector<16x80xf32> to vector<16x16xf32>
    %33 = vector.extract_strided_slice %29 {offsets = [0, 48], sizes = [16, 16], strides = [1, 1]} : vector<16x80xf32> to vector<16x16xf32>
    %34 = vector.extract_strided_slice %29 {offsets = [0, 64], sizes = [16, 16], strides = [1, 1]} : vector<16x80xf32> to vector<16x16xf32>
    %35 = tpu.concatenate %30, %31, %32, %33, %34 in 0 : vector<16x16xf32>, vector<16x16xf32>, vector<16x16xf32>, vector<16x16xf32>, vector<16x16xf32> -> vector<80x16xf32>
    %36 = arith.truncf %35 : vector<80x16xf32> to vector<80x16xbf16>
    %c0_10 = arith.constant 0 : index
    %c0_11 = arith.constant 0 : index
    %c0_12 = arith.constant 0 : index
    %37 = vector.load %arg4[%c0_10, %c0_11, %c0_12] : memref<5x16x16xbf16, #tpu.memory_space<vmem>>, vector<1x16x16xbf16>
    %38 = vector.shape_cast %37 : vector<1x16x16xbf16> to vector<16x16xbf16>
    %cst_13 = arith.constant dense<0.000000e+00> : vector<80x16xf32>
    %39 = tpu.matmul %36, %38, %cst_13 {dimension_numbers = #tpu.dot_dimension_numbers<[1], [0], [0], [1], [0, 0, 1, 1], [], []>} : vector<80x16xbf16>, vector<16x16xbf16>, vector<80x16xf32> -> vector<80x16xf32>
    %40 = vector.extract_strided_slice %39 {offsets = [0, 0], sizes = [16, 16], strides = [1, 1]} : vector<80x16xf32> to vector<16x16xf32>
    %41 = vector.extract_strided_slice %39 {offsets = [16, 0], sizes = [16, 16], strides = [1, 1]} : vector<80x16xf32> to vector<16x16xf32>
    %42 = vector.extract_strided_slice %39 {offsets = [32, 0], sizes = [16, 16], strides = [1, 1]} : vector<80x16xf32> to vector<16x16xf32>
    %43 = vector.extract_strided_slice %39 {offsets = [48, 0], sizes = [16, 16], strides = [1, 1]} : vector<80x16xf32> to vector<16x16xf32>
    %44 = vector.extract_strided_slice %39 {offsets = [64, 0], sizes = [16, 16], strides = [1, 1]} : vector<80x16xf32> to vector<16x16xf32>
    %45 = arith.mulf %40, %40 : vector<16x16xf32>
    %46 = arith.mulf %41, %41 : vector<16x16xf32>
    %47 = arith.mulf %40, %41 : vector<16x16xf32>
    %48 = arith.subf %42, %45 : vector<16x16xf32>
    %49 = arith.subf %43, %46 : vector<16x16xf32>
    %50 = arith.subf %44, %47 : vector<16x16xf32>
    %cst_14 = arith.constant 2.000000e+00 : f32
    %51 = vector.broadcast %cst_14 : f32 to vector<16x16xf32>
    %52 = arith.mulf %51, %50 : vector<16x16xf32>
    %cst_15 = arith.constant 8.99999984E-4 : f32
    %53 = vector.broadcast %cst_15 : f32 to vector<16x16xf32>
    %54 = arith.addf %52, %53 : vector<16x16xf32>
    %55 = arith.addf %48, %49 : vector<16x16xf32>
    %cst_16 = arith.constant 8.99999984E-4 : f32
    %56 = vector.broadcast %cst_16 : f32 to vector<16x16xf32>
    %57 = arith.addf %55, %56 : vector<16x16xf32>
    %58 = tpu.reciprocal %57 {approx = true} : vector<16x16xf32> -> vector<16x16xf32>
    %59 = arith.mulf %54, %58 : vector<16x16xf32>
    %60 = arith.mulf %59, %59 : vector<16x16xf32>
    %61 = arith.mulf %60, %59 : vector<16x16xf32>
    %62 = tpu.concatenate %5, %11, %16, %19, %22, %7, %13, %17, %20, %23 in 1 : vector<16x16xf32>, vector<16x16xf32>, vector<16x16xf32>, vector<16x16xf32>, vector<16x16xf32>, vector<16x16xf32>, vector<16x16xf32>, vector<16x16xf32>, vector<16x16xf32>, vector<16x16xf32> -> vector<16x160xf32>
    %63 = arith.truncf %62 : vector<16x160xf32> to vector<16x160xbf16>
    %c1 = arith.constant 1 : index
    %c0_17 = arith.constant 0 : index
    %c0_18 = arith.constant 0 : index
    %64 = vector.load %arg3[%c1, %c0_17, %c0_18] : memref<5x16x16xbf16, #tpu.memory_space<vmem>>, vector<1x16x16xbf16>
    %65 = vector.shape_cast %64 : vector<1x16x16xbf16> to vector<16x16xbf16>
    %cst_19 = arith.constant dense<0.000000e+00> : vector<16x160xf32>
    %66 = tpu.matmul %65, %63, %cst_19 {dimension_numbers = #tpu.dot_dimension_numbers<[1], [0], [0], [1], [0, 0, 1, 1], [], []>} : vector<16x16xbf16>, vector<16x160xbf16>, vector<16x160xf32> -> vector<16x160xf32>
    %67 = vector.extract_strided_slice %66 {offsets = [0, 0], sizes = [16, 16], strides = [1, 1]} : vector<16x160xf32> to vector<16x16xf32>
    %68 = vector.extract_strided_slice %66 {offsets = [0, 16], sizes = [16, 16], strides = [1, 1]} : vector<16x160xf32> to vector<16x16xf32>
    %69 = vector.extract_strided_slice %66 {offsets = [0, 32], sizes = [16, 16], strides = [1, 1]} : vector<16x160xf32> to vector<16x16xf32>
    %70 = vector.extract_strided_slice %66 {offsets = [0, 48], sizes = [16, 16], strides = [1, 1]} : vector<16x160xf32> to vector<16x16xf32>
    %71 = vector.extract_strided_slice %66 {offsets = [0, 64], sizes = [16, 16], strides = [1, 1]} : vector<16x160xf32> to vector<16x16xf32>
    %72 = vector.extract_strided_slice %66 {offsets = [0, 80], sizes = [16, 16], strides = [1, 1]} : vector<16x160xf32> to vector<16x16xf32>
    %73 = vector.extract_strided_slice %66 {offsets = [0, 96], sizes = [16, 16], strides = [1, 1]} : vector<16x160xf32> to vector<16x16xf32>
    %74 = vector.extract_strided_slice %66 {offsets = [0, 112], sizes = [16, 16], strides = [1, 1]} : vector<16x160xf32> to vector<16x16xf32>
    %75 = vector.extract_strided_slice %66 {offsets = [0, 128], sizes = [16, 16], strides = [1, 1]} : vector<16x160xf32> to vector<16x16xf32>
    %76 = vector.extract_strided_slice %66 {offsets = [0, 144], sizes = [16, 16], strides = [1, 1]} : vector<16x160xf32> to vector<16x16xf32>
    %77 = tpu.concatenate %67, %68, %69, %70, %71, %72, %73, %74, %75, %76 in 0 : vector<16x16xf32>, vector<16x16xf32>, vector<16x16xf32>, vector<16x16xf32>, vector<16x16xf32>, vector<16x16xf32>, vector<16x16xf32>, vector<16x16xf32>, vector<16x16xf32>, vector<16x16xf32> -> vector<160x16xf32>
    %78 = arith.truncf %77 : vector<160x16xf32> to vector<160x16xbf16>
    %c1_20 = arith.constant 1 : index
    %c0_21 = arith.constant 0 : index
    %c0_22 = arith.constant 0 : index
    %79 = vector.load %arg4[%c1_20, %c0_21, %c0_22] : memref<5x16x16xbf16, #tpu.memory_space<vmem>>, vector<1x16x16xbf16>
    %80 = vector.shape_cast %79 : vector<1x16x16xbf16> to vector<16x16xbf16>
    %cst_23 = arith.constant dense<0.000000e+00> : vector<160x16xf32>
    %81 = tpu.matmul %78, %80, %cst_23 {dimension_numbers = #tpu.dot_dimension_numbers<[1], [0], [0], [1], [0, 0, 1, 1], [], []>} : vector<160x16xbf16>, vector<16x16xbf16>, vector<160x16xf32> -> vector<160x16xf32>
    %82 = vector.extract_strided_slice %81 {offsets = [0, 0], sizes = [16, 16], strides = [1, 1]} : vector<160x16xf32> to vector<16x16xf32>
    %83 = vector.extract_strided_slice %81 {offsets = [16, 0], sizes = [16, 16], strides = [1, 1]} : vector<160x16xf32> to vector<16x16xf32>
    %84 = vector.extract_strided_slice %81 {offsets = [32, 0], sizes = [16, 16], strides = [1, 1]} : vector<160x16xf32> to vector<16x16xf32>
    %85 = vector.extract_strided_slice %81 {offsets = [48, 0], sizes = [16, 16], strides = [1, 1]} : vector<160x16xf32> to vector<16x16xf32>
    %86 = vector.extract_strided_slice %81 {offsets = [64, 0], sizes = [16, 16], strides = [1, 1]} : vector<160x16xf32> to vector<16x16xf32>
    %87 = vector.extract_strided_slice %81 {offsets = [80, 0], sizes = [16, 16], strides = [1, 1]} : vector<160x16xf32> to vector<16x16xf32>
    %88 = vector.extract_strided_slice %81 {offsets = [96, 0], sizes = [16, 16], strides = [1, 1]} : vector<160x16xf32> to vector<16x16xf32>
    %89 = vector.extract_strided_slice %81 {offsets = [112, 0], sizes = [16, 16], strides = [1, 1]} : vector<160x16xf32> to vector<16x16xf32>
    %90 = vector.extract_strided_slice %81 {offsets = [128, 0], sizes = [16, 16], strides = [1, 1]} : vector<160x16xf32> to vector<16x16xf32>
    %91 = vector.extract_strided_slice %81 {offsets = [144, 0], sizes = [16, 16], strides = [1, 1]} : vector<160x16xf32> to vector<16x16xf32>
    %92 = arith.mulf %82, %82 : vector<16x16xf32>
    %93 = arith.mulf %83, %83 : vector<16x16xf32>
    %94 = arith.mulf %82, %83 : vector<16x16xf32>
    %95 = arith.subf %84, %92 : vector<16x16xf32>
    %96 = arith.subf %85, %93 : vector<16x16xf32>
    %97 = arith.subf %86, %94 : vector<16x16xf32>
    %cst_24 = arith.constant 2.000000e+00 : f32
    %98 = vector.broadcast %cst_24 : f32 to vector<16x16xf32>
    %99 = arith.mulf %98, %97 : vector<16x16xf32>
    %cst_25 = arith.constant 8.99999984E-4 : f32
    %100 = vector.broadcast %cst_25 : f32 to vector<16x16xf32>
    %101 = arith.addf %99, %100 : vector<16x16xf32>
    %102 = arith.addf %95, %96 : vector<16x16xf32>
    %cst_26 = arith.constant 8.99999984E-4 : f32
    %103 = vector.broadcast %cst_26 : f32 to vector<16x16xf32>
    %104 = arith.addf %102, %103 : vector<16x16xf32>
    %105 = tpu.reciprocal %104 {approx = true} : vector<16x16xf32> -> vector<16x16xf32>
    %106 = arith.mulf %101, %105 : vector<16x16xf32>
    %107 = arith.mulf %106, %106 : vector<16x16xf32>
    %108 = arith.mulf %61, %107 : vector<16x16xf32>
    %109 = arith.mulf %87, %87 : vector<16x16xf32>
    %110 = arith.mulf %88, %88 : vector<16x16xf32>
    %111 = arith.mulf %87, %88 : vector<16x16xf32>
    %112 = arith.subf %89, %109 : vector<16x16xf32>
    %113 = arith.subf %90, %110 : vector<16x16xf32>
    %114 = arith.subf %91, %111 : vector<16x16xf32>
    %cst_27 = arith.constant 2.000000e+00 : f32
    %115 = vector.broadcast %cst_27 : f32 to vector<16x16xf32>
    %116 = arith.mulf %115, %114 : vector<16x16xf32>
    %cst_28 = arith.constant 8.99999984E-4 : f32
    %117 = vector.broadcast %cst_28 : f32 to vector<16x16xf32>
    %118 = arith.addf %116, %117 : vector<16x16xf32>
    %119 = arith.addf %112, %113 : vector<16x16xf32>
    %cst_29 = arith.constant 8.99999984E-4 : f32
    %120 = vector.broadcast %cst_29 : f32 to vector<16x16xf32>
    %121 = arith.addf %119, %120 : vector<16x16xf32>
    %122 = tpu.reciprocal %121 {approx = true} : vector<16x16xf32> -> vector<16x16xf32>
    %123 = arith.mulf %118, %122 : vector<16x16xf32>
    %124 = arith.mulf %108, %123 : vector<16x16xf32>
    %125 = tpu.concatenate %7, %13, %17, %20, %23 in 1 : vector<16x16xf32>, vector<16x16xf32>, vector<16x16xf32>, vector<16x16xf32>, vector<16x16xf32> -> vector<16x80xf32>
    %126 = arith.truncf %125 : vector<16x80xf32> to vector<16x80xbf16>
    %c2 = arith.constant 2 : index
    %c0_30 = arith.constant 0 : index
    %c0_31 = arith.constant 0 : index
    %127 = vector.load %arg3[%c2, %c0_30, %c0_31] : memref<5x16x16xbf16, #tpu.memory_space<vmem>>, vector<1x16x16xbf16>
    %128 = vector.shape_cast %127 : vector<1x16x16xbf16> to vector<16x16xbf16>
    %cst_32 = arith.constant dense<0.000000e+00> : vector<16x80xf32>
    %129 = tpu.matmul %128, %126, %cst_32 {dimension_numbers = #tpu.dot_dimension_numbers<[1], [0], [0], [1], [0, 0, 1, 1], [], []>} : vector<16x16xbf16>, vector<16x80xbf16>, vector<16x80xf32> -> vector<16x80xf32>
    %130 = vector.extract_strided_slice %129 {offsets = [0, 0], sizes = [16, 16], strides = [1, 1]} : vector<16x80xf32> to vector<16x16xf32>
    %131 = vector.extract_strided_slice %129 {offsets = [0, 16], sizes = [16, 16], strides = [1, 1]} : vector<16x80xf32> to vector<16x16xf32>
    %132 = vector.extract_strided_slice %129 {offsets = [0, 32], sizes = [16, 16], strides = [1, 1]} : vector<16x80xf32> to vector<16x16xf32>
    %133 = vector.extract_strided_slice %129 {offsets = [0, 48], sizes = [16, 16], strides = [1, 1]} : vector<16x80xf32> to vector<16x16xf32>
    %134 = vector.extract_strided_slice %129 {offsets = [0, 64], sizes = [16, 16], strides = [1, 1]} : vector<16x80xf32> to vector<16x16xf32>
    %135 = tpu.concatenate %130, %131, %132, %133, %134 in 0 : vector<16x16xf32>, vector<16x16xf32>, vector<16x16xf32>, vector<16x16xf32>, vector<16x16xf32> -> vector<80x16xf32>
    %136 = arith.truncf %135 : vector<80x16xf32> to vector<80x16xbf16>
    %c2_33 = arith.constant 2 : index
    %c0_34 = arith.constant 0 : index
    %c0_35 = arith.constant 0 : index
    %137 = vector.load %arg4[%c2_33, %c0_34, %c0_35] : memref<5x16x16xbf16, #tpu.memory_space<vmem>>, vector<1x16x16xbf16>
    %138 = vector.shape_cast %137 : vector<1x16x16xbf16> to vector<16x16xbf16>
    %cst_36 = arith.constant dense<0.000000e+00> : vector<80x16xf32>
    %139 = tpu.matmul %136, %138, %cst_36 {dimension_numbers = #tpu.dot_dimension_numbers<[1], [0], [0], [1], [0, 0, 1, 1], [], []>} : vector<80x16xbf16>, vector<16x16xbf16>, vector<80x16xf32> -> vector<80x16xf32>
    %140 = vector.extract_strided_slice %139 {offsets = [0, 0], sizes = [16, 16], strides = [1, 1]} : vector<80x16xf32> to vector<16x16xf32>
    %141 = vector.extract_strided_slice %139 {offsets = [16, 0], sizes = [16, 16], strides = [1, 1]} : vector<80x16xf32> to vector<16x16xf32>
    %142 = vector.extract_strided_slice %139 {offsets = [32, 0], sizes = [16, 16], strides = [1, 1]} : vector<80x16xf32> to vector<16x16xf32>
    %143 = vector.extract_strided_slice %139 {offsets = [48, 0], sizes = [16, 16], strides = [1, 1]} : vector<80x16xf32> to vector<16x16xf32>
    %144 = vector.extract_strided_slice %139 {offsets = [64, 0], sizes = [16, 16], strides = [1, 1]} : vector<80x16xf32> to vector<16x16xf32>
    %145 = arith.mulf %140, %140 : vector<16x16xf32>
    %146 = arith.mulf %141, %141 : vector<16x16xf32>
    %147 = arith.mulf %140, %141 : vector<16x16xf32>
    %148 = arith.subf %142, %145 : vector<16x16xf32>
    %149 = arith.subf %143, %146 : vector<16x16xf32>
    %150 = arith.subf %144, %147 : vector<16x16xf32>
    %cst_37 = arith.constant 2.000000e+00 : f32
    %151 = vector.broadcast %cst_37 : f32 to vector<16x16xf32>
    %152 = arith.mulf %151, %150 : vector<16x16xf32>
    %cst_38 = arith.constant 8.99999984E-4 : f32
    %153 = vector.broadcast %cst_38 : f32 to vector<16x16xf32>
    %154 = arith.addf %152, %153 : vector<16x16xf32>
    %155 = arith.addf %148, %149 : vector<16x16xf32>
    %cst_39 = arith.constant 8.99999984E-4 : f32
    %156 = vector.broadcast %cst_39 : f32 to vector<16x16xf32>
    %157 = arith.addf %155, %156 : vector<16x16xf32>
    %158 = tpu.reciprocal %157 {approx = true} : vector<16x16xf32> -> vector<16x16xf32>
    %159 = arith.mulf %154, %158 : vector<16x16xf32>
    %160 = arith.mulf %159, %159 : vector<16x16xf32>
    %161 = arith.mulf %160, %159 : vector<16x16xf32>
    %162 = arith.mulf %124, %161 : vector<16x16xf32>
    %163 = tpu.concatenate %7, %13, %17, %20, %23, %9, %15, %18, %21, %24 in 1 : vector<16x16xf32>, vector<16x16xf32>, vector<16x16xf32>, vector<16x16xf32>, vector<16x16xf32>, vector<16x16xf32>, vector<16x16xf32>, vector<16x16xf32>, vector<16x16xf32>, vector<16x16xf32> -> vector<16x160xf32>
    %164 = arith.truncf %163 : vector<16x160xf32> to vector<16x160xbf16>
    %c3 = arith.constant 3 : index
    %c0_40 = arith.constant 0 : index
    %c0_41 = arith.constant 0 : index
    %165 = vector.load %arg3[%c3, %c0_40, %c0_41] : memref<5x16x16xbf16, #tpu.memory_space<vmem>>, vector<1x16x16xbf16>
    %166 = vector.shape_cast %165 : vector<1x16x16xbf16> to vector<16x16xbf16>
    %cst_42 = arith.constant dense<0.000000e+00> : vector<16x160xf32>
    %167 = tpu.matmul %166, %164, %cst_42 {dimension_numbers = #tpu.dot_dimension_numbers<[1], [0], [0], [1], [0, 0, 1, 1], [], []>} : vector<16x16xbf16>, vector<16x160xbf16>, vector<16x160xf32> -> vector<16x160xf32>
    %168 = vector.extract_strided_slice %167 {offsets = [0, 0], sizes = [16, 16], strides = [1, 1]} : vector<16x160xf32> to vector<16x16xf32>
    %169 = vector.extract_strided_slice %167 {offsets = [0, 16], sizes = [16, 16], strides = [1, 1]} : vector<16x160xf32> to vector<16x16xf32>
    %170 = vector.extract_strided_slice %167 {offsets = [0, 32], sizes = [16, 16], strides = [1, 1]} : vector<16x160xf32> to vector<16x16xf32>
    %171 = vector.extract_strided_slice %167 {offsets = [0, 48], sizes = [16, 16], strides = [1, 1]} : vector<16x160xf32> to vector<16x16xf32>
    %172 = vector.extract_strided_slice %167 {offsets = [0, 64], sizes = [16, 16], strides = [1, 1]} : vector<16x160xf32> to vector<16x16xf32>
    %173 = vector.extract_strided_slice %167 {offsets = [0, 80], sizes = [16, 16], strides = [1, 1]} : vector<16x160xf32> to vector<16x16xf32>
    %174 = vector.extract_strided_slice %167 {offsets = [0, 96], sizes = [16, 16], strides = [1, 1]} : vector<16x160xf32> to vector<16x16xf32>
    %175 = vector.extract_strided_slice %167 {offsets = [0, 112], sizes = [16, 16], strides = [1, 1]} : vector<16x160xf32> to vector<16x16xf32>
    %176 = vector.extract_strided_slice %167 {offsets = [0, 128], sizes = [16, 16], strides = [1, 1]} : vector<16x160xf32> to vector<16x16xf32>
    %177 = vector.extract_strided_slice %167 {offsets = [0, 144], sizes = [16, 16], strides = [1, 1]} : vector<16x160xf32> to vector<16x16xf32>
    %178 = tpu.concatenate %168, %169, %170, %171, %172, %173, %174, %175, %176, %177 in 0 : vector<16x16xf32>, vector<16x16xf32>, vector<16x16xf32>, vector<16x16xf32>, vector<16x16xf32>, vector<16x16xf32>, vector<16x16xf32>, vector<16x16xf32>, vector<16x16xf32>, vector<16x16xf32> -> vector<160x16xf32>
    %179 = arith.truncf %178 : vector<160x16xf32> to vector<160x16xbf16>
    %c3_43 = arith.constant 3 : index
    %c0_44 = arith.constant 0 : index
    %c0_45 = arith.constant 0 : index
    %180 = vector.load %arg4[%c3_43, %c0_44, %c0_45] : memref<5x16x16xbf16, #tpu.memory_space<vmem>>, vector<1x16x16xbf16>
    %181 = vector.shape_cast %180 : vector<1x16x16xbf16> to vector<16x16xbf16>
    %cst_46 = arith.constant dense<0.000000e+00> : vector<160x16xf32>
    %182 = tpu.matmul %179, %181, %cst_46 {dimension_numbers = #tpu.dot_dimension_numbers<[1], [0], [0], [1], [0, 0, 1, 1], [], []>} : vector<160x16xbf16>, vector<16x16xbf16>, vector<160x16xf32> -> vector<160x16xf32>
    %183 = vector.extract_strided_slice %182 {offsets = [0, 0], sizes = [16, 16], strides = [1, 1]} : vector<160x16xf32> to vector<16x16xf32>
    %184 = vector.extract_strided_slice %182 {offsets = [16, 0], sizes = [16, 16], strides = [1, 1]} : vector<160x16xf32> to vector<16x16xf32>
    %185 = vector.extract_strided_slice %182 {offsets = [32, 0], sizes = [16, 16], strides = [1, 1]} : vector<160x16xf32> to vector<16x16xf32>
    %186 = vector.extract_strided_slice %182 {offsets = [48, 0], sizes = [16, 16], strides = [1, 1]} : vector<160x16xf32> to vector<16x16xf32>
    %187 = vector.extract_strided_slice %182 {offsets = [64, 0], sizes = [16, 16], strides = [1, 1]} : vector<160x16xf32> to vector<16x16xf32>
    %188 = vector.extract_strided_slice %182 {offsets = [80, 0], sizes = [16, 16], strides = [1, 1]} : vector<160x16xf32> to vector<16x16xf32>
    %189 = vector.extract_strided_slice %182 {offsets = [96, 0], sizes = [16, 16], strides = [1, 1]} : vector<160x16xf32> to vector<16x16xf32>
    %190 = vector.extract_strided_slice %182 {offsets = [112, 0], sizes = [16, 16], strides = [1, 1]} : vector<160x16xf32> to vector<16x16xf32>
    %191 = vector.extract_strided_slice %182 {offsets = [128, 0], sizes = [16, 16], strides = [1, 1]} : vector<160x16xf32> to vector<16x16xf32>
    %192 = vector.extract_strided_slice %182 {offsets = [144, 0], sizes = [16, 16], strides = [1, 1]} : vector<160x16xf32> to vector<16x16xf32>
    %193 = arith.mulf %183, %183 : vector<16x16xf32>
    %194 = arith.mulf %184, %184 : vector<16x16xf32>
    %195 = arith.mulf %183, %184 : vector<16x16xf32>
    %196 = arith.subf %185, %193 : vector<16x16xf32>
    %197 = arith.subf %186, %194 : vector<16x16xf32>
    %198 = arith.subf %187, %195 : vector<16x16xf32>
    %cst_47 = arith.constant 2.000000e+00 : f32
    %199 = vector.broadcast %cst_47 : f32 to vector<16x16xf32>
    %200 = arith.mulf %199, %198 : vector<16x16xf32>
    %cst_48 = arith.constant 8.99999984E-4 : f32
    %201 = vector.broadcast %cst_48 : f32 to vector<16x16xf32>
    %202 = arith.addf %200, %201 : vector<16x16xf32>
    %203 = arith.addf %196, %197 : vector<16x16xf32>
    %cst_49 = arith.constant 8.99999984E-4 : f32
    %204 = vector.broadcast %cst_49 : f32 to vector<16x16xf32>
    %205 = arith.addf %203, %204 : vector<16x16xf32>
    %206 = tpu.reciprocal %205 {approx = true} : vector<16x16xf32> -> vector<16x16xf32>
    %207 = arith.mulf %202, %206 : vector<16x16xf32>
    %208 = arith.mulf %162, %207 : vector<16x16xf32>
    %209 = arith.mulf %188, %188 : vector<16x16xf32>
    %210 = arith.mulf %189, %189 : vector<16x16xf32>
    %211 = arith.mulf %188, %189 : vector<16x16xf32>
    %212 = arith.subf %190, %209 : vector<16x16xf32>
    %213 = arith.subf %191, %210 : vector<16x16xf32>
    %214 = arith.subf %192, %211 : vector<16x16xf32>
    %cst_50 = arith.constant 2.000000e+00 : f32
    %215 = vector.broadcast %cst_50 : f32 to vector<16x16xf32>
    %216 = arith.mulf %215, %214 : vector<16x16xf32>
    %cst_51 = arith.constant 8.99999984E-4 : f32
    %217 = vector.broadcast %cst_51 : f32 to vector<16x16xf32>
    %218 = arith.addf %216, %217 : vector<16x16xf32>
    %219 = arith.addf %212, %213 : vector<16x16xf32>
    %cst_52 = arith.constant 8.99999984E-4 : f32
    %220 = vector.broadcast %cst_52 : f32 to vector<16x16xf32>
    %221 = arith.addf %219, %220 : vector<16x16xf32>
    %222 = tpu.reciprocal %221 {approx = true} : vector<16x16xf32> -> vector<16x16xf32>
    %223 = arith.mulf %218, %222 : vector<16x16xf32>
    %224 = arith.mulf %223, %223 : vector<16x16xf32>
    %225 = arith.mulf %208, %224 : vector<16x16xf32>
    %226 = arith.subf %5, %11 : vector<16x16xf32>
    %227 = math.absf %226 : vector<16x16xf32>
    %228 = arith.subf %7, %13 : vector<16x16xf32>
    %229 = math.absf %228 : vector<16x16xf32>
    %230 = arith.subf %9, %15 : vector<16x16xf32>
    %231 = math.absf %230 : vector<16x16xf32>
    %232 = tpu.concatenate %9, %15, %18, %21, %24, %227, %229, %231 in 1 : vector<16x16xf32>, vector<16x16xf32>, vector<16x16xf32>, vector<16x16xf32>, vector<16x16xf32>, vector<16x16xf32>, vector<16x16xf32>, vector<16x16xf32> -> vector<16x128xf32>
    %233 = arith.truncf %232 : vector<16x128xf32> to vector<16x128xbf16>
    %c4 = arith.constant 4 : index
    %c0_53 = arith.constant 0 : index
    %c0_54 = arith.constant 0 : index
    %234 = vector.load %arg3[%c4, %c0_53, %c0_54] : memref<5x16x16xbf16, #tpu.memory_space<vmem>>, vector<1x16x16xbf16>
    %235 = vector.shape_cast %234 : vector<1x16x16xbf16> to vector<16x16xbf16>
    %cst_55 = arith.constant dense<0.000000e+00> : vector<16x128xf32>
    %236 = tpu.matmul %235, %233, %cst_55 {dimension_numbers = #tpu.dot_dimension_numbers<[1], [0], [0], [1], [0, 0, 1, 1], [], []>} : vector<16x16xbf16>, vector<16x128xbf16>, vector<16x128xf32> -> vector<16x128xf32>
    %237 = vector.extract_strided_slice %236 {offsets = [0, 0], sizes = [16, 16], strides = [1, 1]} : vector<16x128xf32> to vector<16x16xf32>
    %238 = vector.extract_strided_slice %236 {offsets = [0, 16], sizes = [16, 16], strides = [1, 1]} : vector<16x128xf32> to vector<16x16xf32>
    %239 = vector.extract_strided_slice %236 {offsets = [0, 32], sizes = [16, 16], strides = [1, 1]} : vector<16x128xf32> to vector<16x16xf32>
    %240 = vector.extract_strided_slice %236 {offsets = [0, 48], sizes = [16, 16], strides = [1, 1]} : vector<16x128xf32> to vector<16x16xf32>
    %241 = vector.extract_strided_slice %236 {offsets = [0, 64], sizes = [16, 16], strides = [1, 1]} : vector<16x128xf32> to vector<16x16xf32>
    %242 = vector.extract_strided_slice %236 {offsets = [0, 80], sizes = [16, 16], strides = [1, 1]} : vector<16x128xf32> to vector<16x16xf32>
    %243 = vector.extract_strided_slice %236 {offsets = [0, 96], sizes = [16, 16], strides = [1, 1]} : vector<16x128xf32> to vector<16x16xf32>
    %244 = vector.extract_strided_slice %236 {offsets = [0, 112], sizes = [16, 16], strides = [1, 1]} : vector<16x128xf32> to vector<16x16xf32>
    %245 = tpu.concatenate %237, %238, %239, %240, %241, %242, %243, %244 in 0 : vector<16x16xf32>, vector<16x16xf32>, vector<16x16xf32>, vector<16x16xf32>, vector<16x16xf32>, vector<16x16xf32>, vector<16x16xf32>, vector<16x16xf32> -> vector<128x16xf32>
    %246 = arith.truncf %245 : vector<128x16xf32> to vector<128x16xbf16>
    %c4_56 = arith.constant 4 : index
    %c0_57 = arith.constant 0 : index
    %c0_58 = arith.constant 0 : index
    %247 = vector.load %arg4[%c4_56, %c0_57, %c0_58] : memref<5x16x16xbf16, #tpu.memory_space<vmem>>, vector<1x16x16xbf16>
    %248 = vector.shape_cast %247 : vector<1x16x16xbf16> to vector<16x16xbf16>
    %cst_59 = arith.constant dense<0.000000e+00> : vector<128x16xf32>
    %249 = tpu.matmul %246, %248, %cst_59 {dimension_numbers = #tpu.dot_dimension_numbers<[1], [0], [0], [1], [0, 0, 1, 1], [], []>} : vector<128x16xbf16>, vector<16x16xbf16>, vector<128x16xf32> -> vector<128x16xf32>
    %250 = vector.extract_strided_slice %249 {offsets = [0, 0], sizes = [16, 16], strides = [1, 1]} : vector<128x16xf32> to vector<16x16xf32>
    %251 = vector.extract_strided_slice %249 {offsets = [16, 0], sizes = [16, 16], strides = [1, 1]} : vector<128x16xf32> to vector<16x16xf32>
    %252 = vector.extract_strided_slice %249 {offsets = [32, 0], sizes = [16, 16], strides = [1, 1]} : vector<128x16xf32> to vector<16x16xf32>
    %253 = vector.extract_strided_slice %249 {offsets = [48, 0], sizes = [16, 16], strides = [1, 1]} : vector<128x16xf32> to vector<16x16xf32>
    %254 = vector.extract_strided_slice %249 {offsets = [64, 0], sizes = [16, 16], strides = [1, 1]} : vector<128x16xf32> to vector<16x16xf32>
    %255 = vector.extract_strided_slice %249 {offsets = [80, 0], sizes = [16, 16], strides = [1, 1]} : vector<128x16xf32> to vector<16x16xf32>
    %256 = vector.extract_strided_slice %249 {offsets = [96, 0], sizes = [16, 16], strides = [1, 1]} : vector<128x16xf32> to vector<16x16xf32>
    %257 = vector.extract_strided_slice %249 {offsets = [112, 0], sizes = [16, 16], strides = [1, 1]} : vector<128x16xf32> to vector<16x16xf32>
    %258 = arith.mulf %250, %250 : vector<16x16xf32>
    %259 = arith.mulf %251, %251 : vector<16x16xf32>
    %260 = arith.mulf %250, %251 : vector<16x16xf32>
    %261 = arith.subf %252, %258 : vector<16x16xf32>
    %262 = arith.subf %253, %259 : vector<16x16xf32>
    %263 = arith.subf %254, %260 : vector<16x16xf32>
    %cst_60 = arith.constant 2.000000e+00 : f32
    %264 = vector.broadcast %cst_60 : f32 to vector<16x16xf32>
    %265 = arith.mulf %264, %263 : vector<16x16xf32>
    %cst_61 = arith.constant 8.99999984E-4 : f32
    %266 = vector.broadcast %cst_61 : f32 to vector<16x16xf32>
    %267 = arith.addf %265, %266 : vector<16x16xf32>
    %268 = arith.addf %261, %262 : vector<16x16xf32>
    %cst_62 = arith.constant 8.99999984E-4 : f32
    %269 = vector.broadcast %cst_62 : f32 to vector<16x16xf32>
    %270 = arith.addf %268, %269 : vector<16x16xf32>
    %271 = tpu.reciprocal %270 {approx = true} : vector<16x16xf32> -> vector<16x16xf32>
    %272 = arith.mulf %267, %271 : vector<16x16xf32>
    %273 = arith.mulf %272, %272 : vector<16x16xf32>
    %274 = arith.mulf %273, %272 : vector<16x16xf32>
    %275 = arith.mulf %225, %274 : vector<16x16xf32>
    %cst_63 = arith.constant 2.000000e+00 : f32
    %276 = vector.broadcast %cst_63 : f32 to vector<16x16xf32>
    %277 = arith.mulf %276, %260 : vector<16x16xf32>
    %cst_64 = arith.constant 9.99999974E-5 : f32
    %278 = vector.broadcast %cst_64 : f32 to vector<16x16xf32>
    %279 = arith.addf %277, %278 : vector<16x16xf32>
    %280 = arith.addf %258, %259 : vector<16x16xf32>
    %cst_65 = arith.constant 9.99999974E-5 : f32
    %281 = vector.broadcast %cst_65 : f32 to vector<16x16xf32>
    %282 = arith.addf %280, %281 : vector<16x16xf32>
    %283 = tpu.reciprocal %282 {approx = true} : vector<16x16xf32> -> vector<16x16xf32>
    %284 = arith.mulf %279, %283 : vector<16x16xf32>
    %285 = arith.mulf %284, %284 : vector<16x16xf32>
    %286 = arith.mulf %285, %284 : vector<16x16xf32>
    %287 = arith.addf %255, %256 : vector<16x16xf32>
    %288 = arith.addf %287, %257 : vector<16x16xf32>
    %cst_66 = arith.constant 0.333333343 : f32
    %289 = vector.broadcast %cst_66 : f32 to vector<16x16xf32>
    %290 = arith.mulf %288, %289 : vector<16x16xf32>
    %291 = arith.mulf %286, %275 : vector<16x16xf32>
    %cst_67 = arith.constant 1.000000e+00 : f32
    %292 = vector.broadcast %cst_67 : f32 to vector<16x16xf32>
    %293 = arith.subf %292, %291 : vector<16x16xf32>
    %cst_68 = arith.constant 2.500000e-02 : f32
    %294 = vector.broadcast %cst_68 : f32 to vector<16x16xf32>
    %295 = arith.mulf %294, %293 : vector<16x16xf32>
    %cst_69 = arith.constant 9.750000e-01 : f32
    %296 = vector.broadcast %cst_69 : f32 to vector<16x16xf32>
    %297 = arith.mulf %296, %290 : vector<16x16xf32>
    %298 = arith.addf %295, %297 : vector<16x16xf32>
    %cst_70 = arith.constant dense<0.000000e+00> : vector<16xf32>
    %299 = vector.multi_reduction <add>, %298, %cst_70 [1] : vector<16x16xf32> to vector<16xf32>
    %300 = vector.shape_cast %299 : vector<16xf32> to vector<16x1xf32>
    %cst_71 = arith.constant dense<0.000000e+00> : vector<1xf32>
    %301 = vector.multi_reduction <add>, %300, %cst_71 [0] : vector<16x1xf32> to vector<1xf32>
    %302 = vector.shape_cast %301 : vector<1xf32> to vector<1x1xf32>
    %cst_72 = arith.constant 2.000000e+02 : f32
    %303 = vector.broadcast %cst_72 : f32 to vector<1x1xf32>
    %304 = arith.mulf %303, %302 : vector<1x1xf32>
    %c0_73 = arith.constant 0 : index
    %c0_74 = arith.constant 0 : index
    %c0_75 = arith.constant 0 : index
    %305 = vector.load %arg5[%c0_73, %c0_74, %c0_75] : memref<1x1x1xf32, #tpu.memory_space<vmem>>, vector<1x1x1xf32>
    %306 = vector.shape_cast %305 : vector<1x1x1xf32> to vector<1x1xf32>
    %307 = vector.shape_cast %304 : vector<1x1xf32> to vector<1x1x1xf32>
    tpu.vector_store %arg5[%c0_73, %c0_74, %c0_75], %307 {strides = array<i32>} : memref<1x1x1xf32, #tpu.memory_space<vmem>>, vector<1x1x1xf32>,
    return
  }
  func.func @transform_0(%arg0: i32) -> (i32, i32, i32, i32) {
    %c0_i32 = arith.constant 0 : i32
    %c0_i32_0 = arith.constant 0 : i32
    %c0_i32_1 = arith.constant 0 : i32
    %c0_i32_2 = arith.constant 0 : i32
    return %arg0, %c0_i32, %c0_i32_0, %c0_i32_1 : i32, i32, i32, i32
  }
  func.func @transform_1(%arg0: i32) -> (i32, i32, i32, i32) {
    %c0_i32 = arith.constant 0 : i32
    %c0_i32_0 = arith.constant 0 : i32
    %c0_i32_1 = arith.constant 0 : i32
    %c0_i32_2 = arith.constant 0 : i32
    return %arg0, %c0_i32, %c0_i32_0, %c0_i32_1 : i32, i32, i32, i32
  }
  func.func @transform_2(%arg0: i32) -> (i32, i32, i32) {
    %c0_i32 = arith.constant 0 : i32
    %c0_i32_0 = arith.constant 0 : i32
    %c0_i32_1 = arith.constant 0 : i32
    %c0_i32_2 = arith.constant 0 : i32
    return %c0_i32, %c0_i32_0, %c0_i32_1 : i32, i32, i32
  }
  func.func @transform_3(%arg0: i32) -> (i32, i32, i32) {
    %c0_i32 = arith.constant 0 : i32
    %c0_i32_0 = arith.constant 0 : i32
    %c0_i32_1 = arith.constant 0 : i32
    %c0_i32_2 = arith.constant 0 : i32
    return %c0_i32, %c0_i32_0, %c0_i32_1 : i32, i32, i32
  }
  func.func @transform_4(%arg0: i32) -> (i32, i32, i32) {
    %c0_i32 = arith.constant 0 : i32
    %c0_i32_0 = arith.constant 0 : i32
    %c0_i32_1 = arith.constant 0 : i32
    return %arg0, %c0_i32, %c0_i32_0 : i32, i32, i32
  }
}

</mosaic_0001>

<llo_original>
// kernel: ms_ssim_l1_loss.1
$region0: #{ms_ssim_l1_loss.1}
  #allocation0 [shape = 'u32[]', space=smem, size = 0x4, offset = 0x4, fixed_abs, tag = 'smem constant byte address 0x4 - core index']
  #allocation1 [shape = 'u32[144,128]{1,0:T(1,128)}', space=vmem, size = 0x12000, scoped, tag = 'internal scratch']
  %s0 = inlined_call_operand.vmem [shape: f32[2,3,16,16], index: 0, kind: input, shape index: {}]
  %s1 = inlined_call_operand.vmem [shape: f32[2,3,16,16], index: 1, kind: input, shape index: {}]
  %s2 = inlined_call_operand.vmem [shape: bf16[5,16,16], index: 2, kind: input, shape index: {}]
  %s3 = inlined_call_operand.vmem [shape: bf16[5,16,16], index: 3, kind: input, shape index: {}]
  %s4 = inlined_call_operand.vmem [shape: f32[2,1,1], index: 4, kind: output, shape index: {}]
  %s5 = sld [smem:[#allocation0]]
  $region49: #{ms_ssim_l1_loss.1} parent=0
    _
  %s7 = ssub.s32 1, %s5
  %s8 = scalar_select 0, %s7, %s5
  loop: start=0, step=1, limit=4
  $region2: #{ms_ssim_l1_loss.1} parent=0 // loop_pre_header
    _
  $region3: #{ms_ssim_l1_loss.1} parent=0 // loop_header
    %s10 = sphi 0, %s14
    %p11 = scmp.ge.s32.totalorder %s10, 4
    %s20 = sphi 0, %s22
    %s23 = sphi 0, %s20
    %s24 = sphi 0, %s23
    %s40 = sphi 0, %s24
    %s46 = sphi 0, %s48
    %s49 = sphi 0, %s46
    %s50 = sphi 0, %s49
    %s66 = sphi 0, %s50
    %s70 = sphi 0, %s70
    %s72 = sphi 0, %s70
    %s73 = sphi 0, %s72
    %s87 = sphi 0, %s73
    %s91 = sphi 0, %s91
    %s93 = sphi 0, %s91
    %s94 = sphi 0, %s93
    %s108 = sphi 0, %s94
    %s114 = sphi 0, %s116
    %s117 = sphi 0, %s114
    %s118 = sphi 0, %s117
    %s134 = sphi 0, %s118
  $region4: #{ms_ssim_l1_loss.1} parent=0 // loop_header_branch
    %13 = sbr.rel (%p11) target = $region8
  $region5: #{ms_ssim_l1_loss.1} parent=0 // loop_body
    %s15 = ssub.s32 %s10, 1
    %s16 = ssub.s32 %s10, 2
    %s17 = sadd.s32 %s10, 1
    %s18 = ssub.s32 %s10, %s17
    %p19 = scmp.eq.s32.totalorder %s18, 0
    %s21 = sadd.s32 %s20, 1
    %s22 = scalar_select %p19, %s20, %s21
    %p25 = pneg %p19
    %p26 = scmp.eq.s32.totalorder %s10, 1
    %p27 = por %p25, %p26
    %p28 = scmp.ne.s32.totalorder %s20, %s23
    %p29 = scmp.eq.s32.totalorder %s10, 0
    %p30 = por %p28, %p29
    %p31 = scmp.ne.s32.totalorder %s20, %s23
    %p32 = scmp.eq.s32.totalorder %s15, 1
    %p33 = por %p31, %p32
    %p34 = scmp.ne.s32.totalorder %s23, %s24
    %p35 = scmp.eq.s32.totalorder %s15, 0
    %p36 = por %p34, %p35
    %p37 = scmp.ne.s32.totalorder %s23, %s24
    %p38 = scmp.eq.s32.totalorder %s16, 1
    %p39 = por %p37, %p38
    %p41 = scmp.ne.s32.totalorder %s24, %s40
    %p42 = scmp.eq.s32.totalorder %s16, 0
    %p43 = por %p41, %p42
    %s44 = ssub.s32 %s10, %s17
    %p45 = scmp.eq.s32.totalorder %s44, 0
    %s47 = sadd.s32 %s46, 1
    %s48 = scalar_select %p45, %s46, %s47
    %p51 = pneg %p45
    %p52 = scmp.eq.s32.totalorder %s10, 1
    %p53 = por %p51, %p52
    %p54 = scmp.ne.s32.totalorder %s46, %s49
    %p55 = scmp.eq.s32.totalorder %s10, 0
    %p56 = por %p54, %p55
    %p57 = scmp.ne.s32.totalorder %s46, %s49
    %p58 = scmp.eq.s32.totalorder %s15, 1
    %p59 = por %p57, %p58
    %p60 = scmp.ne.s32.totalorder %s49, %s50
    %p61 = scmp.eq.s32.totalorder %s15, 0
    %p62 = por %p60, %p61
    %p63 = scmp.ne.s32.totalorder %s49, %s50
    %p64 = scmp.eq.s32.totalorder %s16, 1
    %p65 = por %p63, %p64
    %p67 = scmp.ne.s32.totalorder %s50, %s66
    %p68 = scmp.eq.s32.totalorder %s16, 0
    %p69 = por %p67, %p68
    %s71 = sadd.s32 %s70, 1
    %p74 = scmp.eq.s32.totalorder %s10, 1
    %p75 = scmp.ne.s32.totalorder %s70, %s72
    %p76 = scmp.eq.s32.totalorder %s10, 0
    %p77 = por %p75, %p76
    %p78 = scmp.ne.s32.totalorder %s70, %s72
    %p79 = scmp.eq.s32.totalorder %s15, 1
    %p80 = por %p78, %p79
    %p81 = scmp.ne.s32.totalorder %s72, %s73
    %p82 = scmp.eq.s32.totalorder %s15, 0
    %p83 = por %p81, %p82
    %p84 = scmp.ne.s32.totalorder %s72, %s73
    %p85 = scmp.eq.s32.totalorder %s16, 1
    %p86 = por %p84, %p85
    %p88 = scmp.ne.s32.totalorder %s73, %s87
    %p89 = scmp.eq.s32.totalorder %s16, 0
    %p90 = por %p88, %p89
    %s92 = sadd.s32 %s91, 1
    %p95 = scmp.eq.s32.totalorder %s10, 1
    %p96 = scmp.ne.s32.totalorder %s91, %s93
    %p97 = scmp.eq.s32.totalorder %s10, 0
    %p98 = por %p96, %p97
    %p99 = scmp.ne.s32.totalorder %s91, %s93
    %p100 = scmp.eq.s32.totalorder %s15, 1
    %p101 = por %p99, %p100
    %p102 = scmp.ne.s32.totalorder %s93, %s94
    %p103 = scmp.eq.s32.totalorder %s15, 0
    %p104 = por %p102, %p103
    %p105 = scmp.ne.s32.totalorder %s93, %s94
    %p106 = scmp.eq.s32.totalorder %s16, 1
    %p107 = por %p105, %p106
    %p109 = scmp.ne.s32.totalorder %s94, %s108
    %p110 = scmp.eq.s32.totalorder %s16, 0
    %p111 = por %p109, %p110
    %s112 = ssub.s32 %s10, %s17
    %p113 = scmp.eq.s32.totalorder %s112, 0
    %s115 = sadd.s32 %s114, 1
    %s116 = scalar_select %p113, %s114, %s115
    %p119 = pneg %p113
    %p120 = scmp.eq.s32.totalorder %s10, 1
    %p121 = por %p119, %p120
    %p122 = scmp.ne.s32.totalorder %s114, %s117
    %p123 = scmp.eq.s32.totalorder %s10, 0
    %p124 = por %p122, %p123
    %p125 = scmp.ne.s32.totalorder %s114, %s117
    %p126 = scmp.eq.s32.totalorder %s15, 1
    %p127 = por %p125, %p126
    %p128 = scmp.ne.s32.totalorder %s117, %s118
    %p129 = scmp.eq.s32.totalorder %s15, 0
    %p130 = por %p128, %p129
    %p131 = scmp.ne.s32.totalorder %s117, %s118
    %p132 = scmp.eq.s32.totalorder %s16, 1
    %p133 = por %p131, %p132
    %p135 = scmp.ne.s32.totalorder %s118, %s134
    %p136 = scmp.eq.s32.totalorder %s16, 0
    %p137 = por %p135, %p136
    %p138 = scmp.le.s32.totalorder 1, %s10
    %p139 = scmp.lt.s32.totalorder %s10, 3
    %p140 = pnand %p138, %p139
    %p141 = pneg %p140
    // Predicated region
    $region9: #{ms_ssim_l1_loss.1} parent=5 // pred_check
      _
    $region10: #{ms_ssim_l1_loss.1} parent=5 // pred_check_branch
      %143 = sbr.rel (%p140) target = $region12
    $region11: #{ms_ssim_l1_loss.1} parent=5 // pred_region
      %s144 = ssub.s32 %s10, 1
      // Predicated region
      $region13: #{ms_ssim_l1_loss.1} parent=11 // pred_check
        %p145 = pneg %p83
      $region14: #{ms_ssim_l1_loss.1} parent=11 // pred_check_branch
        %147 = sbr.rel (%p145) target = $region16
      $region15: #{ms_ssim_l1_loss.1} parent=11 // pred_region
        _
      $region16: #{ms_ssim_l1_loss.1} parent=11 // pred_fallthru
        _
      // Predicated region
      $region17: #{ms_ssim_l1_loss.1} parent=11 // pred_check
        %p148 = pneg %p104
      $region18: #{ms_ssim_l1_loss.1} parent=11 // pred_check_branch
        %150 = sbr.rel (%p148) target = $region20
      $region19: #{ms_ssim_l1_loss.1} parent=11 // pred_region
        _
      $region20: #{ms_ssim_l1_loss.1} parent=11 // pred_fallthru
        _
    $region12: #{ms_ssim_l1_loss.1} parent=5 // pred_fallthru
      _
    %p151 = scmp.lt.s32.totalorder %s10, 2
    // Predicated region
    $region21: #{ms_ssim_l1_loss.1} parent=5 // pred_check
      %p152 = pneg %p151
    $region22: #{ms_ssim_l1_loss.1} parent=5 // pred_check_branch
      %154 = sbr.rel (%p152) target = $region24
    $region23: #{ms_ssim_l1_loss.1} parent=5 // pred_region
      // Predicated region
      $region25: #{ms_ssim_l1_loss.1} parent=23 // pred_check
        %p155 = pneg %p30
      $region26: #{ms_ssim_l1_loss.1} parent=23 // pred_check_branch
        %157 = sbr.rel (%p155) target = $region28
      $region27: #{ms_ssim_l1_loss.1} parent=23 // pred_region
        %p158 = scmp.lt.s32.totalorder %s10, 1
        %s159 = scalar_select %p158, %s10, 1
        %s160 = smul.addr %s159, 6
        %s161 = smul.addr %s160, 8
        %s162 = scalar_lea.vmem %s0, %s161
      $region28: #{ms_ssim_l1_loss.1} parent=23 // pred_fallthru
        _
      // Predicated region
      $region29: #{ms_ssim_l1_loss.1} parent=23 // pred_check
        %p163 = pneg %p56
      $region30: #{ms_ssim_l1_loss.1} parent=23 // pred_check_branch
        %165 = sbr.rel (%p163) target = $region32
      $region31: #{ms_ssim_l1_loss.1} parent=23 // pred_region
        %p166 = scmp.lt.s32.totalorder %s10, 1
        %s167 = scalar_select %p166, %s10, 1
        %s168 = smul.addr %s167, 6
        %s169 = smul.addr %s168, 8
        %s170 = scalar_lea.vmem %s1, %s169
      $region32: #{ms_ssim_l1_loss.1} parent=23 // pred_fallthru
        _
    $region24: #{ms_ssim_l1_loss.1} parent=5 // pred_fallthru
      _
    %p171 = scmp.le.s32.totalorder 1, %s10
    %p172 = scmp.lt.s32.totalorder %s10, 3
    %p173 = pnand %p171, %p172
    %p174 = pneg %p173
    // Predicated region
    $region33: #{ms_ssim_l1_loss.1} parent=5 // pred_check
      _
    $region34: #{ms_ssim_l1_loss.1} parent=5 // pred_check_branch
      %176 = sbr.rel (%p173) target = $region36
    $region35: #{ms_ssim_l1_loss.1} parent=5 // pred_region
      %s177 = ssub.s32 %s10, 1
      %p178 = scmp.lt.s32.totalorder %s15, 1
      %s179 = scalar_select %p178, %s15, 1
      %s180 = smul.addr %s179, 6
      %s181 = smul.addr %s180, 8
      %s182 = scalar_lea.vmem %s0, %s181
      %p183 = pneg %p36
      %p184 = pneg %p33
      %p185 = scmp.lt.s32.totalorder %s15, 1
      %s186 = scalar_select %p185, %s15, 1
      %s187 = smul.addr %s186, 6
      %s188 = smul.addr %s187, 8
      %s189 = scalar_lea.vmem %s1, %s188
      %p190 = pneg %p62
      %p191 = pneg %p59
      %p192 = pneg %p83
      %p193 = pneg %p80
      %p194 = pneg %p104
      %p195 = pneg %p101
      %p196 = pneg %p130
      %p197 = pneg %p127
      %p198 = scmp.lt.s32.totalorder %s15, 1
      %s199 = scalar_select %p198, %s15, 1
      %s200 = scalar_lea.vmem %s4, %s199
      %p201 = scmp.lt.s32.totalorder %s15, 1
      %s202 = scalar_select %p201, %s15, 1
      %s203 = smul.addr %s202, 6
      %s204 = smul.addr %s203, 8
      %s205 = scalar_lea.vmem %s0, %s204
      %p206 = scmp.lt.s32.totalorder %s15, 1
      %s207 = scalar_select %p206, %s15, 1
      %s208 = smul.addr %s207, 6
      %s209 = smul.addr %s208, 8
      %s210 = scalar_lea.vmem %s1, %s209
      %p211 = scmp.lt.s32.totalorder %s15, 1
      %s212 = scalar_select %p211, %s15, 1
      %s213 = scalar_lea.vmem %s4, %s212
      %v215 = vld [vmem:[%s205] sm:$0xff]
      %v216 = vld [vmem:[%s205 + $0x8] sm:$0xff]
      %v217 = vld [vmem:[%s205 + $0x10] sm:$0xff]
      %v218 = vld [vmem:[%s205 + $0x18] sm:$0xff]
      %v219 = vld [vmem:[%s205 + $0x20] sm:$0xff]
      %v220 = vld [vmem:[%s205 + $0x28] sm:$0xff]
      %v221 = vld [vmem:[%s210] sm:$0xff]
      %v222 = vld [vmem:[%s210 + $0x8] sm:$0xff]
      %v223 = vld [vmem:[%s210 + $0x10] sm:$0xff]
      %v224 = vld [vmem:[%s210 + $0x18] sm:$0xff]
      %v225 = vld [vmem:[%s210 + $0x20] sm:$0xff]
      %v226 = vld [vmem:[%s210 + $0x28] sm:$0xff]
      %v227 = vmul.f32 %v215, %v215
      %v228 = vmul.f32 %v216, %v216
      %v229 = vmul.f32 %v217, %v217
      %v230 = vmul.f32 %v218, %v218
      %v231 = vmul.f32 %v219, %v219
      %v232 = vmul.f32 %v220, %v220
      %v233 = vmul.f32 %v221, %v221
      %v234 = vmul.f32 %v222, %v222
      %v235 = vmul.f32 %v223, %v223
      %v236 = vmul.f32 %v224, %v224
      %v237 = vmul.f32 %v225, %v225
      %v238 = vmul.f32 %v226, %v226
      %v239 = vmul.f32 %v215, %v221
      %v240 = vmul.f32 %v216, %v222
      %v241 = vmul.f32 %v217, %v223
      %v242 = vmul.f32 %v218, %v224
      %v243 = vmul.f32 %v219, %v225
      %v244 = vmul.f32 %v220, %v226
      %247 = vrot.lane.b32.xlu0 %v221, 16
      %v248 = vpop.permute.xlu0 %247
      %249 = vrot.lane.b32.xlu0 %v222, 16
      %v250 = vpop.permute.xlu0 %249
      %255 = vrot.lane.b32.xlu0 %v227, 32
      %v256 = vpop.permute.xlu0 %255
      %257 = vrot.lane.b32.xlu0 %v228, 32
      %v258 = vpop.permute.xlu0 %257
      %263 = vrot.lane.b32.xlu0 %v233, 48
      %v264 = vpop.permute.xlu0 %263
      %265 = vrot.lane.b32.xlu0 %v234, 48
      %v266 = vpop.permute.xlu0 %265
      %271 = vrot.lane.b32.xlu0 %v239, 64
      %v272 = vpop.permute.xlu0 %271
      %273 = vrot.lane.b32.xlu0 %v240, 64
      %v274 = vpop.permute.xlu0 %273
      %vm277 = vcmask 130048
      %v278 = vsel %vm277, %v215, %v248
      %v279 = vsel %vm277, %v216, %v250
      %vm280 = vcmask 261120
      %v281 = vsel %vm280, %v278, %v256
      %v282 = vsel %vm280, %v279, %v258
      %vm283 = vcmask 392192
      %v284 = vsel %vm283, %v281, %v264
      %v285 = vsel %vm283, %v282, %v266
      %vm286 = vcmask 523264
      %v287 = vsel %vm286, %v284, %v272
      %v288 = vsel %vm286, %v285, %v274
      %v289 = vpack.c.bf16 %v288, %v287
      %v290 = vld [vmem:[%s2] sm:$0xf]
      %v291 = vld [vmem:[%s2 + $0x4] sm:$0xf]
      %v294 = vunpack.c.l.b16 %v290
      %v295 = vunpack.c.l.b16 %v291
      %v296 = vpack.c.b16 %v295, %v294
      %v298 = vsel %vm277, %v296, 0
      %300 = vmatprep.subr.bf16.mxu0 0
      %301 = vmatpush1.bf16.msra.mxu0 0
      %302 = vmatprep.subr.bf16.mxu0 0
      %303 = vmatpush1.bf16.msra.mxu0 0
      %304 = vmatprep.subr.bf16.mxu0 0
      %305 = vmatpush1.bf16.msra.mxu0 0
      %306 = vmatprep.subr.bf16.mxu0 0
      %307 = vmatpush1.bf16.msra.mxu0 0
      %308 = vmatprep.subr.bf16.mxu0 0
      %309 = vmatpush1.bf16.msra.mxu0 0
      %310 = vmatprep.subr.bf16.mxu0 0
      %311 = vmatpush1.bf16.msra.mxu0 0
      %312 = vmatprep.subr.bf16.mxu0 0
      %313 = vmatpush1.bf16.msra.mxu0 0
      %314 = vmatprep.subr.bf16.mxu0 0
      %315 = vmatpush1.bf16.msra.mxu0 %v289
      %316 = vmatprep.subr.bf16.mxu0 0
      %317 = vmatpush2.bf16.msra.mxu0 0
      %318 = vmatprep.subr.bf16.mxu0 0
      %319 = vmatpush2.bf16.msra.mxu0 0
      %320 = vmatprep.subr.bf16.mxu0 0
      %321 = vmatpush2.bf16.msra.mxu0 0
      %322 = vmatprep.subr.bf16.mxu0 0
      %323 = vmatpush2.bf16.msra.mxu0 0
      %324 = vmatprep.subr.bf16.mxu0 0
      %325 = vmatpush2.bf16.msra.mxu0 0
      %326 = vmatprep.subr.bf16.mxu0 0
      %327 = vmatpush2.bf16.msra.mxu0 0
      %328 = vmatprep.subr.bf16.mxu0 0
      %329 = vmatpush2.bf16.msra.mxu0 0
      %330 = vmatprep.subr.bf16.mxu0 0
      %331 = vmatpush2.bf16.msra.mxu0 0
      %332 = vmatprep.mubr.bf16.mxu0 0
      %333 = vmatmul.mubr.bf16.gmra.mxu0 %v298
      %v334 = vpop.f32.mrf.mxu0
      %v335 = vadd.f32 0.0, %v334
      %v336 = vpop.f32.mrf.mxu0
      %v337 = vpop.f32.mrf.mxu0
      %v338 = vadd.f32 0.0, %v337
      %v339 = vpop.f32.mrf.mxu0
      %340 = vdwg.mxu0
      %343 = vrot.lane.b32.xlu0 %v335, 112
      %v344 = vpop.permute.xlu0 %343
      %345 = vrot.lane.b32.xlu0 %v338, 112
      %v346 = vpop.permute.xlu0 %345
      %349 = vrot.lane.b32.xlu0 %v335, 96
      %v350 = vpop.permute.xlu0 %349
      %351 = vrot.lane.b32.xlu0 %v338, 96
      %v352 = vpop.permute.xlu0 %351
      %355 = vrot.lane.b32.xlu0 %v335, 80
      %v356 = vpop.permute.xlu0 %355
      %357 = vrot.lane.b32.xlu0 %v338, 80
      %v358 = vpop.permute.xlu0 %357
      %361 = vrot.lane.b32.xlu0 %v335, 64
      %v362 = vpop.permute.xlu0 %361
      %363 = vrot.lane.b32.xlu0 %v338, 64
      %v364 = vpop.permute.xlu0 %363
      %v367 = vpack.c.bf16 %v338, %v335
      %v368 = vpack.c.bf16 %v346, %v344
      %v369 = vpack.c.bf16 %v352, %v350
      %v370 = vpack.c.bf16 %v358, %v356
      %v371 = vpack.c.bf16 %v364, %v362
      %v372 = vld [vmem:[%s3] sm:$0xf]
      %v373 = vld [vmem:[%s3 + $0x4] sm:$0xf]
      %v376 = vunpack.c.l.b16 %v372
      %v377 = vunpack.c.l.b16 %v373
      %v378 = vpack.c.b16 %v377, %v376
      %v381 = vsel %vm277, %v367, 0
      %v384 = vsel %vm277, %v368, 0
      %v387 = vsel %vm277, %v369, 0
      %v390 = vsel %vm277, %v370, 0
      %v393 = vsel %vm277, %v371, 0
      %395 = vmatprep.subr.bf16.mxu0 0
      %396 = vmatpush1.bf16.msra.mxu0 0
      %397 = vmatprep.subr.bf16.mxu0 0
      %398 = vmatpush1.bf16.msra.mxu0 0
      %399 = vmatprep.subr.bf16.mxu0 0
      %400 = vmatpush1.bf16.msra.mxu0 0
      %401 = vmatprep.subr.bf16.mxu0 0
      %402 = vmatpush1.bf16.msra.mxu0 0
      %403 = vmatprep.subr.bf16.mxu0 0
      %404 = vmatpush1.bf16.msra.mxu0 0
      %405 = vmatprep.subr.bf16.mxu0 0
      %406 = vmatpush1.bf16.msra.mxu0 0
      %407 = vmatprep.subr.bf16.mxu0 0
      %408 = vmatpush1.bf16.msra.mxu0 0
      %409 = vmatprep.subr.bf16.mxu0 0
      %410 = vmatpush1.bf16.msra.mxu0 %v378
      %411 = vmatprep.subr.bf16.mxu0 0
      %412 = vmatpush2.bf16.msra.mxu0 0
      %413 = vmatprep.subr.bf16.mxu0 0
      %414 = vmatpush2.bf16.msra.mxu0 0
      %415 = vmatprep.subr.bf16.mxu0 0
      %416 = vmatpush2.bf16.msra.mxu0 0
      %417 = vmatprep.subr.bf16.mxu0 0
      %418 = vmatpush2.bf16.msra.mxu0 0
      %419 = vmatprep.subr.bf16.mxu0 0
      %420 = vmatpush2.bf16.msra.mxu0 0
      %421 = vmatprep.subr.bf16.mxu0 0
      %422 = vmatpush2.bf16.msra.mxu0 0
      %423 = vmatprep.subr.bf16.mxu0 0
      %424 = vmatpush2.bf16.msra.mxu0 0
      %425 = vmatprep.subr.bf16.mxu0 0
      %426 = vmatpush2.bf16.msra.mxu0 0
      %427 = vmatprep.mubr.bf16.mxu0 0
      %428 = vmatmul.mubr.bf16.gmra.mxu0 %v381
      %v429 = vpop.f32.mrf.mxu0
      %v430 = vadd.f32 0.0, %v429
      %v431 = vpop.f32.mrf.mxu0
      %v432 = vpop.f32.mrf.mxu0
      %v433 = vadd.f32 0.0, %v432
      %v434 = vpop.f32.mrf.mxu0
      %435 = vmatprep.mubr.bf16.mxu0 0
      %436 = vmatmul.mubr.bf16.gmra.mxu0 %v384
      %v437 = vpop.f32.mrf.mxu0
      %v438 = vadd.f32 0.0, %v437
      %v439 = vpop.f32.mrf.mxu0
      %v440 = vpop.f32.mrf.mxu0
      %v441 = vadd.f32 0.0, %v440
      %v442 = vpop.f32.mrf.mxu0
      %443 = vmatprep.mubr.bf16.mxu0 0
      %444 = vmatmul.mubr.bf16.gmra.mxu0 %v387
      %v445 = vpop.f32.mrf.mxu0
      %v446 = vadd.f32 0.0, %v445
      %v447 = vpop.f32.mrf.mxu0
      %v448 = vpop.f32.mrf.mxu0
      %v449 = vadd.f32 0.0, %v448
      %v450 = vpop.f32.mrf.mxu0
      %451 = vmatprep.mubr.bf16.mxu0 0
      %452 = vmatmul.mubr.bf16.gmra.mxu0 %v390
      %v453 = vpop.f32.mrf.mxu0
      %v454 = vadd.f32 0.0, %v453
      %v455 = vpop.f32.mrf.mxu0
      %v456 = vpop.f32.mrf.mxu0
      %v457 = vadd.f32 0.0, %v456
      %v458 = vpop.f32.mrf.mxu0
      %459 = vmatprep.mubr.bf16.mxu0 0
      %460 = vmatmul.mubr.bf16.gmra.mxu0 %v393
      %v461 = vpop.f32.mrf.mxu0
      %v462 = vadd.f32 0.0, %v461
      %v463 = vpop.f32.mrf.mxu0
      %v464 = vpop.f32.mrf.mxu0
      %v465 = vadd.f32 0.0, %v464
      %v466 = vpop.f32.mrf.mxu0
      %467 = vdwg.mxu0
      %v468 = vmul.f32 %v430, %v430
      %v469 = vmul.f32 %v433, %v433
      %v470 = vmul.f32 %v438, %v438
      %v471 = vmul.f32 %v441, %v441
      %v472 = vmul.f32 %v430, %v438
      %v473 = vmul.f32 %v433, %v441
      %v474 = vsub.f32 %v446, %v468
      %v475 = vsub.f32 %v449, %v469
      %v476 = vsub.f32 %v454, %v470
      %v477 = vsub.f32 %v457, %v471
      %v478 = vsub.f32 %v462, %v472
      %v479 = vsub.f32 %v465, %v473
      %v480 = vmul.f32 %v478, 2.0
      %v481 = vmul.f32 %v479, 2.0
      %v482 = vadd.f32 %v480, 0.0009
      %v483 = vadd.f32 %v481, 0.0009
      %v484 = vadd.f32 %v474, %v476
      %v485 = vadd.f32 %v475, %v477
      %v486 = vadd.f32 %v484, 0.0009
      %v487 = vadd.f32 %v485, 0.0009
      %v488 = vrcp.pop %v486
      %v489 = vrcp.pop %v487
      %v490 = vmul.f32 %v482, %v488
      %v491 = vmul.f32 %v483, %v489
      %v492 = vmul.f32 %v490, %v490
      %v493 = vmul.f32 %v491, %v491
      %v494 = vmul.f32 %v492, %v490
      %v495 = vmul.f32 %v493, %v491
      %498 = vrot.lane.b32.xlu0 %v217, 80
      %v499 = vpop.permute.xlu0 %498
      %500 = vrot.lane.b32.xlu0 %v218, 80
      %v501 = vpop.permute.xlu0 %500
      %506 = vrot.lane.b32.xlu0 %v223, 96
      %v507 = vpop.permute.xlu0 %506
      %508 = vrot.lane.b32.xlu0 %v224, 96
      %v509 = vpop.permute.xlu0 %508
      %514 = vrot.lane.b32.xlu0 %v229, 112
      %v515 = vpop.permute.xlu0 %514
      %516 = vrot.lane.b32.xlu0 %v230, 112
      %v517 = vpop.permute.xlu0 %516
      %522 = vrot.lane.b32.xlu0 %v241, 16
      %v523 = vpop.permute.xlu0 %522
      %524 = vrot.lane.b32.xlu0 %v242, 16
      %v525 = vpop.permute.xlu0 %524
      %vm528 = vcmask 654336
      %v529 = vsel %vm528, %v287, %v499
      %v530 = vsel %vm528, %v288, %v501
      %vm531 = vcmask 785408
      %v532 = vsel %vm531, %v529, %v507
      %v533 = vsel %vm531, %v530, %v509
      %vm534 = vcmask 916480
      %v535 = vsel %vm534, %v532, %v515
      %v536 = vsel %vm534, %v533, %v517
      %v537 = vsel %vm277, %v235, %v523
      %v538 = vsel %vm277, %v236, %v525
      %v539 = vpack.c.bf16 %v536, %v535
      %v540 = vpack.c.bf16 %v538, %v537
      %s541 = scalar_lea.vmem %s2, 8
      %v542 = vld [vmem:[%s541] sm:$0xf]
      %v543 = vld [vmem:[%s541 + $0x4] sm:$0xf]
      %v546 = vunpack.c.l.b16 %v542
      %v547 = vunpack.c.l.b16 %v543
      %v548 = vpack.c.b16 %v547, %v546
      %v550 = vsel %vm277, %v548, 0
      %552 = vmatprep.subr.bf16.mxu0 0
      %553 = vmatpush1.bf16.msra.mxu0 0
      %554 = vmatprep.subr.bf16.mxu0 0
      %555 = vmatpush1.bf16.msra.mxu0 0
      %556 = vmatprep.subr.bf16.mxu0 0
      %557 = vmatpush1.bf16.msra.mxu0 0
      %558 = vmatprep.subr.bf16.mxu0 0
      %559 = vmatpush1.bf16.msra.mxu0 0
      %560 = vmatprep.subr.bf16.mxu0 0
      %561 = vmatpush1.bf16.msra.mxu0 0
      %562 = vmatprep.subr.bf16.mxu0 0
      %563 = vmatpush1.bf16.msra.mxu0 0
      %564 = vmatprep.subr.bf16.mxu0 0
      %565 = vmatpush1.bf16.msra.mxu0 0
      %566 = vmatprep.subr.bf16.mxu0 %v540
      %567 = vmatpush1.bf16.msra.mxu0 %v539
      %568 = vmatprep.subr.bf16.mxu0 0
      %569 = vmatpush2.bf16.msra.mxu0 0
      %570 = vmatprep.subr.bf16.mxu0 0
      %571 = vmatpush2.bf16.msra.mxu0 0
      %572 = vmatprep.subr.bf16.mxu0 0
      %573 = vmatpush2.bf16.msra.mxu0 0
      %574 = vmatprep.subr.bf16.mxu0 0
      %575 = vmatpush2.bf16.msra.mxu0 0
      %576 = vmatprep.subr.bf16.mxu0 0
      %577 = vmatpush2.bf16.msra.mxu0 0
      %578 = vmatprep.subr.bf16.mxu0 0
      %579 = vmatpush2.bf16.msra.mxu0 0
      %580 = vmatprep.subr.bf16.mxu0 0
      %581 = vmatpush2.bf16.msra.mxu0 0
      %582 = vmatprep.subr.bf16.mxu0 0
      %583 = vmatpush2.bf16.msra.mxu0 0
      %584 = vmatprep.mubr.bf16.mxu0 0
      %585 = vmatmul.mubr.bf16.gmra.mxu0 %v550
      %v586 = vpop.f32.mrf.mxu0
      %v587 = vadd.f32 0.0, %v586
      %v588 = vpop.f32.mrf.mxu0
      %v589 = vadd.f32 0.0, %v588
      %v590 = vpop.f32.mrf.mxu0
      %v591 = vadd.f32 0.0, %v590
      %v592 = vpop.f32.mrf.mxu0
      %v593 = vadd.f32 0.0, %v592
      %594 = vdwg.mxu0
      %597 = vrot.lane.b32.xlu0 %v587, 112
      %v598 = vpop.permute.xlu0 %597
      %599 = vrot.lane.b32.xlu0 %v591, 112
      %v600 = vpop.permute.xlu0 %599
      %603 = vrot.lane.b32.xlu0 %v587, 96
      %v604 = vpop.permute.xlu0 %603
      %605 = vrot.lane.b32.xlu0 %v591, 96
      %v606 = vpop.permute.xlu0 %605
      %609 = vrot.lane.b32.xlu0 %v587, 80
      %v610 = vpop.permute.xlu0 %609
      %611 = vrot.lane.b32.xlu0 %v591, 80
      %v612 = vpop.permute.xlu0 %611
      %615 = vrot.lane.b32.xlu0 %v587, 64
      %v616 = vpop.permute.xlu0 %615
      %617 = vrot.lane.b32.xlu0 %v591, 64
      %v618 = vpop.permute.xlu0 %617
      %621 = vrot.lane.b32.xlu0 %v587, 48
      %v622 = vpop.permute.xlu0 %621
      %623 = vrot.lane.b32.xlu0 %v591, 48
      %v624 = vpop.permute.xlu0 %623
      %627 = vrot.lane.b32.xlu0 %v587, 32
      %v628 = vpop.permute.xlu0 %627
      %629 = vrot.lane.b32.xlu0 %v591, 32
      %v630 = vpop.permute.xlu0 %629
      %633 = vrot.lane.b32.xlu0 %v587, 16
      %v634 = vpop.permute.xlu0 %633
      %635 = vrot.lane.b32.xlu0 %v591, 16
      %v636 = vpop.permute.xlu0 %635
      %641 = vrot.lane.b32.xlu0 %v589, 112
      %v642 = vpop.permute.xlu0 %641
      %643 = vrot.lane.b32.xlu0 %v593, 112
      %v644 = vpop.permute.xlu0 %643
      %v647 = vpack.c.bf16 %v591, %v587
      %v648 = vpack.c.bf16 %v600, %v598
      %v649 = vpack.c.bf16 %v606, %v604
      %v650 = vpack.c.bf16 %v612, %v610
      %v651 = vpack.c.bf16 %v618, %v616
      %v652 = vpack.c.bf16 %v624, %v622
      %v653 = vpack.c.bf16 %v630, %v628
      %v654 = vpack.c.bf16 %v636, %v634
      %v655 = vpack.c.bf16 %v593, %v589
      %v656 = vpack.c.bf16 %v644, %v642
      %s657 = scalar_lea.vmem %s3, 8
      %v658 = vld [vmem:[%s657] sm:$0xf]
      %v659 = vld [vmem:[%s657 + $0x4] sm:$0xf]
      %v662 = vunpack.c.l.b16 %v658
      %v663 = vunpack.c.l.b16 %v659
      %v664 = vpack.c.b16 %v663, %v662
      %v667 = vsel %vm277, %v647, 0
      %v670 = vsel %vm277, %v648, 0
      %v673 = vsel %vm277, %v649, 0
      %v676 = vsel %vm277, %v650, 0
      %v679 = vsel %vm277, %v651, 0
      %v682 = vsel %vm277, %v652, 0
      %v685 = vsel %vm277, %v653, 0
      %v688 = vsel %vm277, %v654, 0
      %v691 = vsel %vm277, %v655, 0
      %v694 = vsel %vm277, %v656, 0
      %696 = vmatprep.subr.bf16.mxu0 0
      %697 = vmatpush1.bf16.msra.mxu0 0
      %698 = vmatprep.subr.bf16.mxu0 0
      %699 = vmatpush1.bf16.msra.mxu0 0
      %700 = vmatprep.subr.bf16.mxu0 0
      %701 = vmatpush1.bf16.msra.mxu0 0
      %702 = vmatprep.subr.bf16.mxu0 0
      %703 = vmatpush1.bf16.msra.mxu0 0
      %704 = vmatprep.subr.bf16.mxu0 0
      %705 = vmatpush1.bf16.msra.mxu0 0
      %706 = vmatprep.subr.bf16.mxu0 0
      %707 = vmatpush1.bf16.msra.mxu0 0
      %708 = vmatprep.subr.bf16.mxu0 0
      %709 = vmatpush1.bf16.msra.mxu0 0
      %710 = vmatprep.subr.bf16.mxu0 0
      %711 = vmatpush1.bf16.msra.mxu0 %v664
      %712 = vmatprep.subr.bf16.mxu0 0
      %713 = vmatpush2.bf16.msra.mxu0 0
      %714 = vmatprep.subr.bf16.mxu0 0
      %715 = vmatpush2.bf16.msra.mxu0 0
      %716 = vmatprep.subr.bf16.mxu0 0
      %717 = vmatpush2.bf16.msra.mxu0 0
      %718 = vmatprep.subr.bf16.mxu0 0
      %719 = vmatpush2.bf16.msra.mxu0 0
      %720 = vmatprep.subr.bf16.mxu0 0
      %721 = vmatpush2.bf16.msra.mxu0 0
      %722 = vmatprep.subr.bf16.mxu0 0
      %723 = vmatpush2.bf16.msra.mxu0 0
      %724 = vmatprep.subr.bf16.mxu0 0
      %725 = vmatpush2.bf16.msra.mxu0 0
      %726 = vmatprep.subr.bf16.mxu0 0
      %727 = vmatpush2.bf16.msra.mxu0 0
      %728 = vmatprep.mubr.bf16.mxu0 0
      %729 = vmatmul.mubr.bf16.gmra.mxu0 %v667
      %v730 = vpop.f32.mrf.mxu0
      %v731 = vadd.f32 0.0, %v730
      %v732 = vpop.f32.mrf.mxu0
      %v733 = vpop.f32.mrf.mxu0
      %v734 = vadd.f32 0.0, %v733
      %v735 = vpop.f32.mrf.mxu0
      %736 = vmatprep.mubr.bf16.mxu0 0
      %737 = vmatmul.mubr.bf16.gmra.mxu0 %v670
      %v738 = vpop.f32.mrf.mxu0
      %v739 = vadd.f32 0.0, %v738
      %v740 = vpop.f32.mrf.mxu0
      %v741 = vpop.f32.mrf.mxu0
      %v742 = vadd.f32 0.0, %v741
      %v743 = vpop.f32.mrf.mxu0
      %744 = vmatprep.mubr.bf16.mxu0 0
      %745 = vmatmul.mubr.bf16.gmra.mxu0 %v673
      %v746 = vpop.f32.mrf.mxu0
      %v747 = vadd.f32 0.0, %v746
      %v748 = vpop.f32.mrf.mxu0
      %v749 = vpop.f32.mrf.mxu0
      %v750 = vadd.f32 0.0, %v749
      %v751 = vpop.f32.mrf.mxu0
      %752 = vmatprep.mubr.bf16.mxu0 0
      %753 = vmatmul.mubr.bf16.gmra.mxu0 %v676
      %v754 = vpop.f32.mrf.mxu0
      %v755 = vadd.f32 0.0, %v754
      %v756 = vpop.f32.mrf.mxu0
      %v757 = vpop.f32.mrf.mxu0
      %v758 = vadd.f32 0.0, %v757
      %v759 = vpop.f32.mrf.mxu0
      %760 = vmatprep.mubr.bf16.mxu0 0
      %761 = vmatmul.mubr.bf16.gmra.mxu0 %v679
      %v762 = vpop.f32.mrf.mxu0
      %v763 = vadd.f32 0.0, %v762
      %v764 = vpop.f32.mrf.mxu0
      %v765 = vpop.f32.mrf.mxu0
      %v766 = vadd.f32 0.0, %v765
      %v767 = vpop.f32.mrf.mxu0
      %768 = vmatprep.mubr.bf16.mxu0 0
      %769 = vmatmul.mubr.bf16.gmra.mxu0 %v682
      %v770 = vpop.f32.mrf.mxu0
      %v771 = vadd.f32 0.0, %v770
      %v772 = vpop.f32.mrf.mxu0
      %v773 = vpop.f32.mrf.mxu0
      %v774 = vadd.f32 0.0, %v773
      %v775 = vpop.f32.mrf.mxu0
      %776 = vmatprep.mubr.bf16.mxu0 0
      %777 = vmatmul.mubr.bf16.gmra.mxu0 %v685
      %v778 = vpop.f32.mrf.mxu0
      %v779 = vadd.f32 0.0, %v778
      %v780 = vpop.f32.mrf.mxu0
      %v781 = vpop.f32.mrf.mxu0
      %v782 = vadd.f32 0.0, %v781
      %v783 = vpop.f32.mrf.mxu0
      %784 = vmatprep.mubr.bf16.mxu0 0
      %785 = vmatmul.mubr.bf16.gmra.mxu0 %v688
      %v786 = vpop.f32.mrf.mxu0
      %v787 = vadd.f32 0.0, %v786
      %v788 = vpop.f32.mrf.mxu0
      %v789 = vpop.f32.mrf.mxu0
      %v790 = vadd.f32 0.0, %v789
      %v791 = vpop.f32.mrf.mxu0
      %792 = vmatprep.mubr.bf16.mxu0 0
      %793 = vmatmul.mubr.bf16.gmra.mxu0 %v691
      %v794 = vpop.f32.mrf.mxu0
      %v795 = vadd.f32 0.0, %v794
      %v796 = vpop.f32.mrf.mxu0
      %v797 = vpop.f32.mrf.mxu0
      %v798 = vadd.f32 0.0, %v797
      %v799 = vpop.f32.mrf.mxu0
      %800 = vmatprep.mubr.bf16.mxu0 0
      %801 = vmatmul.mubr.bf16.gmra.mxu0 %v694
      %v802 = vpop.f32.mrf.mxu0
      %v803 = vadd.f32 0.0, %v802
      %v804 = vpop.f32.mrf.mxu0
      %v805 = vpop.f32.mrf.mxu0
      %v806 = vadd.f32 0.0, %v805
      %v807 = vpop.f32.mrf.mxu0
      %808 = vdwg.mxu0
      %v809 = vmul.f32 %v731, %v731
      %v810 = vmul.f32 %v734, %v734
      %v811 = vmul.f32 %v739, %v739
      %v812 = vmul.f32 %v742, %v742
      %v813 = vmul.f32 %v731, %v739
      %v814 = vmul.f32 %v734, %v742
      %v815 = vsub.f32 %v747, %v809
      %v816 = vsub.f32 %v750, %v810
      %v817 = vsub.f32 %v755, %v811
      %v818 = vsub.f32 %v758, %v812
      %v819 = vsub.f32 %v763, %v813
      %v820 = vsub.f32 %v766, %v814
      %v821 = vmul.f32 %v819, 2.0
      %v822 = vmul.f32 %v820, 2.0
      %v823 = vadd.f32 %v821, 0.0009
      %v824 = vadd.f32 %v822, 0.0009
      %v825 = vadd.f32 %v815, %v817
      %v826 = vadd.f32 %v816, %v818
      %v827 = vadd.f32 %v825, 0.0009
      %v828 = vadd.f32 %v826, 0.0009
      %v829 = vrcp.pop %v827
      %v830 = vrcp.pop %v828
      %v831 = vmul.f32 %v823, %v829
      %v832 = vmul.f32 %v824, %v830
      %v833 = vmul.f32 %v831, %v831
      %v834 = vmul.f32 %v832, %v832
      %v835 = vmul.f32 %v494, %v833
      %v836 = vmul.f32 %v495, %v834
      %v837 = vmul.f32 %v771, %v771
      %v838 = vmul.f32 %v774, %v774
      %v839 = vmul.f32 %v779, %v779
      %v840 = vmul.f32 %v782, %v782
      %v841 = vmul.f32 %v771, %v779
      %v842 = vmul.f32 %v774, %v782
      %v843 = vsub.f32 %v787, %v837
      %v844 = vsub.f32 %v790, %v838
      %v845 = vsub.f32 %v795, %v839
      %v846 = vsub.f32 %v798, %v840
      %v847 = vsub.f32 %v803, %v841
      %v848 = vsub.f32 %v806, %v842
      %v849 = vmul.f32 %v847, 2.0
      %v850 = vmul.f32 %v848, 2.0
      %v851 = vadd.f32 %v849, 0.0009
      %v852 = vadd.f32 %v850, 0.0009
      %v853 = vadd.f32 %v843, %v845
      %v854 = vadd.f32 %v844, %v846
      %v855 = vadd.f32 %v853, 0.0009
      %v856 = vadd.f32 %v854, 0.0009
      %v857 = vrcp.pop %v855
      %v858 = vrcp.pop %v856
      %v859 = vmul.f32 %v851, %v857
      %v860 = vmul.f32 %v852, %v858
      %v861 = vmul.f32 %v835, %v859
      %v862 = vmul.f32 %v836, %v860
      %863 = vrot.lane.b32.xlu0 %v223, 16
      %v864 = vpop.permute.xlu0 %863
      %865 = vrot.lane.b32.xlu0 %v224, 16
      %v866 = vpop.permute.xlu0 %865
      %869 = vrot.lane.b32.xlu0 %v229, 32
      %v870 = vpop.permute.xlu0 %869
      %871 = vrot.lane.b32.xlu0 %v230, 32
      %v872 = vpop.permute.xlu0 %871
      %877 = vrot.lane.b32.xlu0 %v235, 48
      %v878 = vpop.permute.xlu0 %877
      %879 = vrot.lane.b32.xlu0 %v236, 48
      %v880 = vpop.permute.xlu0 %879
      %883 = vrot.lane.b32.xlu0 %v241, 64
      %v884 = vpop.permute.xlu0 %883
      %885 = vrot.lane.b32.xlu0 %v242, 64
      %v886 = vpop.permute.xlu0 %885
      %v889 = vsel %vm277, %v217, %v864
      %v890 = vsel %vm277, %v218, %v866
      %v891 = vsel %vm280, %v889, %v870
      %v892 = vsel %vm280, %v890, %v872
      %v893 = vsel %vm283, %v891, %v878
      %v894 = vsel %vm283, %v892, %v880
      %v895 = vsel %vm286, %v893, %v884
      %v896 = vsel %vm286, %v894, %v886
      %v897 = vpack.c.bf16 %v896, %v895
      %s898 = scalar_lea.vmem %s2, 16
      %v899 = vld [vmem:[%s898] sm:$0xf]
      %v900 = vld [vmem:[%s898 + $0x4] sm:$0xf]
      %v903 = vunpack.c.l.b16 %v899
      %v904 = vunpack.c.l.b16 %v900
      %v905 = vpack.c.b16 %v904, %v903
      %v907 = vsel %vm277, %v905, 0
      %909 = vmatprep.subr.bf16.mxu0 0
      %910 = vmatpush1.bf16.msra.mxu0 0
      %911 = vmatprep.subr.bf16.mxu0 0
      %912 = vmatpush1.bf16.msra.mxu0 0
      %913 = vmatprep.subr.bf16.mxu0 0
      %914 = vmatpush1.bf16.msra.mxu0 0
      %915 = vmatprep.subr.bf16.mxu0 0
      %916 = vmatpush1.bf16.msra.mxu0 0
      %917 = vmatprep.subr.bf16.mxu0 0
      %918 = vmatpush1.bf16.msra.mxu0 0
      %919 = vmatprep.subr.bf16.mxu0 0
      %920 = vmatpush1.bf16.msra.mxu0 0
      %921 = vmatprep.subr.bf16.mxu0 0
      %922 = vmatpush1.bf16.msra.mxu0 0
      %923 = vmatprep.subr.bf16.mxu0 0
      %924 = vmatpush1.bf16.msra.mxu0 %v897
      %925 = vmatprep.subr.bf16.mxu0 0
      %926 = vmatpush2.bf16.msra.mxu0 0
      %927 = vmatprep.subr.bf16.mxu0 0
      %928 = vmatpush2.bf16.msra.mxu0 0
      %929 = vmatprep.subr.bf16.mxu0 0
      %930 = vmatpush2.bf16.msra.mxu0 0
      %931 = vmatprep.subr.bf16.mxu0 0
      %932 = vmatpush2.bf16.msra.mxu0 0
      %933 = vmatprep.subr.bf16.mxu0 0
      %934 = vmatpush2.bf16.msra.mxu0 0
      %935 = vmatprep.subr.bf16.mxu0 0
      %936 = vmatpush2.bf16.msra.mxu0 0
      %937 = vmatprep.subr.bf16.mxu0 0
      %938 = vmatpush2.bf16.msra.mxu0 0
      %939 = vmatprep.subr.bf16.mxu0 0
      %940 = vmatpush2.bf16.msra.mxu0 0
      %941 = vmatprep.mubr.bf16.mxu0 0
      %942 = vmatmul.mubr.bf16.gmra.mxu0 %v907
      %v943 = vpop.f32.mrf.mxu0
      %v944 = vadd.f32 0.0, %v943
      %v945 = vpop.f32.mrf.mxu0
      %v946 = vpop.f32.mrf.mxu0
      %v947 = vadd.f32 0.0, %v946
      %v948 = vpop.f32.mrf.mxu0
      %949 = vdwg.mxu0
      %952 = vrot.lane.b32.xlu0 %v944, 112
      %v953 = vpop.permute.xlu0 %952
      %954 = vrot.lane.b32.xlu0 %v947, 112
      %v955 = vpop.permute.xlu0 %954
      %958 = vrot.lane.b32.xlu0 %v944, 96
      %v959 = vpop.permute.xlu0 %958
      %960 = vrot.lane.b32.xlu0 %v947, 96
      %v961 = vpop.permute.xlu0 %960
      %964 = vrot.lane.b32.xlu0 %v944, 80
      %v965 = vpop.permute.xlu0 %964
      %966 = vrot.lane.b32.xlu0 %v947, 80
      %v967 = vpop.permute.xlu0 %966
      %970 = vrot.lane.b32.xlu0 %v944, 64
      %v971 = vpop.permute.xlu0 %970
      %972 = vrot.lane.b32.xlu0 %v947, 64
      %v973 = vpop.permute.xlu0 %972
      %v976 = vpack.c.bf16 %v947, %v944
      %v977 = vpack.c.bf16 %v955, %v953
      %v978 = vpack.c.bf16 %v961, %v959
      %v979 = vpack.c.bf16 %v967, %v965
      %v980 = vpack.c.bf16 %v973, %v971
      %s981 = scalar_lea.vmem %s3, 16
      %v982 = vld [vmem:[%s981] sm:$0xf]
      %v983 = vld [vmem:[%s981 + $0x4] sm:$0xf]
      %v986 = vunpack.c.l.b16 %v982
      %v987 = vunpack.c.l.b16 %v983
      %v988 = vpack.c.b16 %v987, %v986
      %v991 = vsel %vm277, %v976, 0
      %v994 = vsel %vm277, %v977, 0
      %v997 = vsel %vm277, %v978, 0
      %v1000 = vsel %vm277, %v979, 0
      %v1003 = vsel %vm277, %v980, 0
      %1005 = vmatprep.subr.bf16.mxu0 0
      %1006 = vmatpush1.bf16.msra.mxu0 0
      %1007 = vmatprep.subr.bf16.mxu0 0
      %1008 = vmatpush1.bf16.msra.mxu0 0
      %1009 = vmatprep.subr.bf16.mxu0 0
      %1010 = vmatpush1.bf16.msra.mxu0 0
      %1011 = vmatprep.subr.bf16.mxu0 0
      %1012 = vmatpush1.bf16.msra.mxu0 0
      %1013 = vmatprep.subr.bf16.mxu0 0
      %1014 = vmatpush1.bf16.msra.mxu0 0
      %1015 = vmatprep.subr.bf16.mxu0 0
      %1016 = vmatpush1.bf16.msra.mxu0 0
      %1017 = vmatprep.subr.bf16.mxu0 0
      %1018 = vmatpush1.bf16.msra.mxu0 0
      %1019 = vmatprep.subr.bf16.mxu0 0
      %1020 = vmatpush1.bf16.msra.mxu0 %v988
      %1021 = vmatprep.subr.bf16.mxu0 0
      %1022 = vmatpush2.bf16.msra.mxu0 0
      %1023 = vmatprep.subr.bf16.mxu0 0
      %1024 = vmatpush2.bf16.msra.mxu0 0
      %1025 = vmatprep.subr.bf16.mxu0 0
      %1026 = vmatpush2.bf16.msra.mxu0 0
      %1027 = vmatprep.subr.bf16.mxu0 0
      %1028 = vmatpush2.bf16.msra.mxu0 0
      %1029 = vmatprep.subr.bf16.mxu0 0
      %1030 = vmatpush2.bf16.msra.mxu0 0
      %1031 = vmatprep.subr.bf16.mxu0 0
      %1032 = vmatpush2.bf16.msra.mxu0 0
      %1033 = vmatprep.subr.bf16.mxu0 0
      %1034 = vmatpush2.bf16.msra.mxu0 0
      %1035 = vmatprep.subr.bf16.mxu0 0
      %1036 = vmatpush2.bf16.msra.mxu0 0
      %1037 = vmatprep.mubr.bf16.mxu0 0
      %1038 = vmatmul.mubr.bf16.gmra.mxu0 %v991
      %v1039 = vpop.f32.mrf.mxu0
      %v1040 = vadd.f32 0.0, %v1039
      %v1041 = vpop.f32.mrf.mxu0
      %v1042 = vpop.f32.mrf.mxu0
      %v1043 = vadd.f32 0.0, %v1042
      %v1044 = vpop.f32.mrf.mxu0
      %1045 = vmatprep.mubr.bf16.mxu0 0
      %1046 = vmatmul.mubr.bf16.gmra.mxu0 %v994
      %v1047 = vpop.f32.mrf.mxu0
      %v1048 = vadd.f32 0.0, %v1047
      %v1049 = vpop.f32.mrf.mxu0
      %v1050 = vpop.f32.mrf.mxu0
      %v1051 = vadd.f32 0.0, %v1050
      %v1052 = vpop.f32.mrf.mxu0
      %1053 = vmatprep.mubr.bf16.mxu0 0
      %1054 = vmatmul.mubr.bf16.gmra.mxu0 %v997
      %v1055 = vpop.f32.mrf.mxu0
      %v1056 = vadd.f32 0.0, %v1055
      %v1057 = vpop.f32.mrf.mxu0
      %v1058 = vpop.f32.mrf.mxu0
      %v1059 = vadd.f32 0.0, %v1058
      %v1060 = vpop.f32.mrf.mxu0
      %1061 = vmatprep.mubr.bf16.mxu0 0
      %1062 = vmatmul.mubr.bf16.gmra.mxu0 %v1000
      %v1063 = vpop.f32.mrf.mxu0
      %v1064 = vadd.f32 0.0, %v1063
      %v1065 = vpop.f32.mrf.mxu0
      %v1066 = vpop.f32.mrf.mxu0
      %v1067 = vadd.f32 0.0, %v1066
      %v1068 = vpop.f32.mrf.mxu0
      %1069 = vmatprep.mubr.bf16.mxu0 0
      %1070 = vmatmul.mubr.bf16.gmra.mxu0 %v1003
      %v1071 = vpop.f32.mrf.mxu0
      %v1072 = vadd.f32 0.0, %v1071
      %v1073 = vpop.f32.mrf.mxu0
      %v1074 = vpop.f32.mrf.mxu0
      %v1075 = vadd.f32 0.0, %v1074
      %v1076 = vpop.f32.mrf.mxu0
      %1077 = vdwg.mxu0
      %v1078 = vmul.f32 %v1040, %v1040
      %v1079 = vmul.f32 %v1043, %v1043
      %v1080 = vmul.f32 %v1048, %v1048
      %v1081 = vmul.f32 %v1051, %v1051
      %v1082 = vmul.f32 %v1040, %v1048
      %v1083 = vmul.f32 %v1043, %v1051
      %v1084 = vsub.f32 %v1056, %v1078
      %v1085 = vsub.f32 %v1059, %v1079
      %v1086 = vsub.f32 %v1064, %v1080
      %v1087 = vsub.f32 %v1067, %v1081
      %v1088 = vsub.f32 %v1072, %v1082
      %v1089 = vsub.f32 %v1075, %v1083
      %v1090 = vmul.f32 %v1088, 2.0
      %v1091 = vmul.f32 %v1089, 2.0
      %v1092 = vadd.f32 %v1090, 0.0009
      %v1093 = vadd.f32 %v1091, 0.0009
      %v1094 = vadd.f32 %v1084, %v1086
      %v1095 = vadd.f32 %v1085, %v1087
      %v1096 = vadd.f32 %v1094, 0.0009
      %v1097 = vadd.f32 %v1095, 0.0009
      %v1098 = vrcp.pop %v1096
      %v1099 = vrcp.pop %v1097
      %v1100 = vmul.f32 %v1092, %v1098
      %v1101 = vmul.f32 %v1093, %v1099
      %v1102 = vmul.f32 %v1100, %v1100
      %v1103 = vmul.f32 %v1101, %v1101
      %v1104 = vmul.f32 %v1102, %v1100
      %v1105 = vmul.f32 %v1103, %v1101
      %v1106 = vmul.f32 %v861, %v1104
      %v1107 = vmul.f32 %v862, %v1105
      %1110 = vrot.lane.b32.xlu0 %v219, 80
      %v1111 = vpop.permute.xlu0 %1110
      %1112 = vrot.lane.b32.xlu0 %v220, 80
      %v1113 = vpop.permute.xlu0 %1112
      %1118 = vrot.lane.b32.xlu0 %v225, 96
      %v1119 = vpop.permute.xlu0 %1118
      %1120 = vrot.lane.b32.xlu0 %v226, 96
      %v1121 = vpop.permute.xlu0 %1120
      %1126 = vrot.lane.b32.xlu0 %v231, 112
      %v1127 = vpop.permute.xlu0 %1126
      %1128 = vrot.lane.b32.xlu0 %v232, 112
      %v1129 = vpop.permute.xlu0 %1128
      %1134 = vrot.lane.b32.xlu0 %v243, 16
      %v1135 = vpop.permute.xlu0 %1134
      %1136 = vrot.lane.b32.xlu0 %v244, 16
      %v1137 = vpop.permute.xlu0 %1136
      %v1140 = vsel %vm528, %v895, %v1111
      %v1141 = vsel %vm528, %v896, %v1113
      %v1142 = vsel %vm531, %v1140, %v1119
      %v1143 = vsel %vm531, %v1141, %v1121
      %v1144 = vsel %vm534, %v1142, %v1127
      %v1145 = vsel %vm534, %v1143, %v1129
      %v1146 = vsel %vm277, %v237, %v1135
      %v1147 = vsel %vm277, %v238, %v1137
      %v1148 = vpack.c.bf16 %v1145, %v1144
      %v1149 = vpack.c.bf16 %v1147, %v1146
      %s1150 = scalar_lea.vmem %s2, 24
      %v1151 = vld [vmem:[%s1150] sm:$0xf]
      %v1152 = vld [vmem:[%s1150 + $0x4] sm:$0xf]
      %v1155 = vunpack.c.l.b16 %v1151
      %v1156 = vunpack.c.l.b16 %v1152
      %v1157 = vpack.c.b16 %v1156, %v1155
      %v1159 = vsel %vm277, %v1157, 0
      %1161 = vmatprep.subr.bf16.mxu0 0
      %1162 = vmatpush1.bf16.msra.mxu0 0
      %1163 = vmatprep.subr.bf16.mxu0 0
      %1164 = vmatpush1.bf16.msra.mxu0 0
      %1165 = vmatprep.subr.bf16.mxu0 0
      %1166 = vmatpush1.bf16.msra.mxu0 0
      %1167 = vmatprep.subr.bf16.mxu0 0
      %1168 = vmatpush1.bf16.msra.mxu0 0
      %1169 = vmatprep.subr.bf16.mxu0 0
      %1170 = vmatpush1.bf16.msra.mxu0 0
      %1171 = vmatprep.subr.bf16.mxu0 0
      %1172 = vmatpush1.bf16.msra.mxu0 0
      %1173 = vmatprep.subr.bf16.mxu0 0
      %1174 = vmatpush1.bf16.msra.mxu0 0
      %1175 = vmatprep.subr.bf16.mxu0 %v1149
      %1176 = vmatpush1.bf16.msra.mxu0 %v1148
      %1177 = vmatprep.subr.bf16.mxu0 0
      %1178 = vmatpush2.bf16.msra.mxu0 0
      %1179 = vmatprep.subr.bf16.mxu0 0
      %1180 = vmatpush2.bf16.msra.mxu0 0
      %1181 = vmatprep.subr.bf16.mxu0 0
      %1182 = vmatpush2.bf16.msra.mxu0 0
      %1183 = vmatprep.subr.bf16.mxu0 0
      %1184 = vmatpush2.bf16.msra.mxu0 0
      %1185 = vmatprep.subr.bf16.mxu0 0
      %1186 = vmatpush2.bf16.msra.mxu0 0
      %1187 = vmatprep.subr.bf16.mxu0 0
      %1188 = vmatpush2.bf16.msra.mxu0 0
      %1189 = vmatprep.subr.bf16.mxu0 0
      %1190 = vmatpush2.bf16.msra.mxu0 0
      %1191 = vmatprep.subr.bf16.mxu0 0
      %1192 = vmatpush2.bf16.msra.mxu0 0
      %1193 = vmatprep.mubr.bf16.mxu0 0
      %1194 = vmatmul.mubr.bf16.gmra.mxu0 %v1159
      %v1195 = vpop.f32.mrf.mxu0
      %v1196 = vadd.f32 0.0, %v1195
      %v1197 = vpop.f32.mrf.mxu0
      %v1198 = vadd.f32 0.0, %v1197
      %v1199 = vpop.f32.mrf.mxu0
      %v1200 = vadd.f32 0.0, %v1199
      %v1201 = vpop.f32.mrf.mxu0
      %v1202 = vadd.f32 0.0, %v1201
      %1203 = vdwg.mxu0
      %1206 = vrot.lane.b32.xlu0 %v1196, 112
      %v1207 = vpop.permute.xlu0 %1206
      %1208 = vrot.lane.b32.xlu0 %v1200, 112
      %v1209 = vpop.permute.xlu0 %1208
      %1212 = vrot.lane.b32.xlu0 %v1196, 96
      %v1213 = vpop.permute.xlu0 %1212
      %1214 = vrot.lane.b32.xlu0 %v1200, 96
      %v1215 = vpop.permute.xlu0 %1214
      %1218 = vrot.lane.b32.xlu0 %v1196, 80
      %v1219 = vpop.permute.xlu0 %1218
      %1220 = vrot.lane.b32.xlu0 %v1200, 80
      %v1221 = vpop.permute.xlu0 %1220
      %1224 = vrot.lane.b32.xlu0 %v1196, 64
      %v1225 = vpop.permute.xlu0 %1224
      %1226 = vrot.lane.b32.xlu0 %v1200, 64
      %v1227 = vpop.permute.xlu0 %1226
      %1230 = vrot.lane.b32.xlu0 %v1196, 48
      %v1231 = vpop.permute.xlu0 %1230
      %1232 = vrot.lane.b32.xlu0 %v1200, 48
      %v1233 = vpop.permute.xlu0 %1232
      %1236 = vrot.lane.b32.xlu0 %v1196, 32
      %v1237 = vpop.permute.xlu0 %1236
      %1238 = vrot.lane.b32.xlu0 %v1200, 32
      %v1239 = vpop.permute.xlu0 %1238
      %1242 = vrot.lane.b32.xlu0 %v1196, 16
      %v1243 = vpop.permute.xlu0 %1242
      %1244 = vrot.lane.b32.xlu0 %v1200, 16
      %v1245 = vpop.permute.xlu0 %1244
      %1250 = vrot.lane.b32.xlu0 %v1198, 112
      %v1251 = vpop.permute.xlu0 %1250
      %1252 = vrot.lane.b32.xlu0 %v1202, 112
      %v1253 = vpop.permute.xlu0 %1252
      %v1256 = vpack.c.bf16 %v1200, %v1196
      %v1257 = vpack.c.bf16 %v1209, %v1207
      %v1258 = vpack.c.bf16 %v1215, %v1213
      %v1259 = vpack.c.bf16 %v1221, %v1219
      %v1260 = vpack.c.bf16 %v1227, %v1225
      %v1261 = vpack.c.bf16 %v1233, %v1231
      %v1262 = vpack.c.bf16 %v1239, %v1237
      %v1263 = vpack.c.bf16 %v1245, %v1243
      %v1264 = vpack.c.bf16 %v1202, %v1198
      %v1265 = vpack.c.bf16 %v1253, %v1251
      %s1266 = scalar_lea.vmem %s3, 24
      %v1267 = vld [vmem:[%s1266] sm:$0xf]
      %v1268 = vld [vmem:[%s1266 + $0x4] sm:$0xf]
      %v1271 = vunpack.c.l.b16 %v1267
      %v1272 = vunpack.c.l.b16 %v1268
      %v1273 = vpack.c.b16 %v1272, %v1271
      %v1276 = vsel %vm277, %v1256, 0
      %v1279 = vsel %vm277, %v1257, 0
      %v1282 = vsel %vm277, %v1258, 0
      %v1285 = vsel %vm277, %v1259, 0
      %v1288 = vsel %vm277, %v1260, 0
      %v1291 = vsel %vm277, %v1261, 0
      %v1294 = vsel %vm277, %v1262, 0
      %v1297 = vsel %vm277, %v1263, 0
      %v1300 = vsel %vm277, %v1264, 0
      %v1303 = vsel %vm277, %v1265, 0
      %1305 = vmatprep.subr.bf16.mxu0 0
      %1306 = vmatpush1.bf16.msra.mxu0 0
      %1307 = vmatprep.subr.bf16.mxu0 0
      %1308 = vmatpush1.bf16.msra.mxu0 0
      %1309 = vmatprep.subr.bf16.mxu0 0
      %1310 = vmatpush1.bf16.msra.mxu0 0
      %1311 = vmatprep.subr.bf16.mxu0 0
      %1312 = vmatpush1.bf16.msra.mxu0 0
      %1313 = vmatprep.subr.bf16.mxu0 0
      %1314 = vmatpush1.bf16.msra.mxu0 0
      %1315 = vmatprep.subr.bf16.mxu0 0
      %1316 = vmatpush1.bf16.msra.mxu0 0
      %1317 = vmatprep.subr.bf16.mxu0 0
      %1318 = vmatpush1.bf16.msra.mxu0 0
      %1319 = vmatprep.subr.bf16.mxu0 0
      %1320 = vmatpush1.bf16.msra.mxu0 %v1273
      %1321 = vmatprep.subr.bf16.mxu0 0
      %1322 = vmatpush2.bf16.msra.mxu0 0
      %1323 = vmatprep.subr.bf16.mxu0 0
      %1324 = vmatpush2.bf16.msra.mxu0 0
      %1325 = vmatprep.subr.bf16.mxu0 0
      %1326 = vmatpush2.bf16.msra.mxu0 0
      %1327 = vmatprep.subr.bf16.mxu0 0
      %1328 = vmatpush2.bf16.msra.mxu0 0
      %1329 = vmatprep.subr.bf16.mxu0 0
      %1330 = vmatpush2.bf16.msra.mxu0 0
      %1331 = vmatprep.subr.bf16.mxu0 0
      %1332 = vmatpush2.bf16.msra.mxu0 0
      %1333 = vmatprep.subr.bf16.mxu0 0
      %1334 = vmatpush2.bf16.msra.mxu0 0
      %1335 = vmatprep.subr.bf16.mxu0 0
      %1336 = vmatpush2.bf16.msra.mxu0 0
      %1337 = vmatprep.mubr.bf16.mxu0 0
      %1338 = vmatmul.mubr.bf16.gmra.mxu0 %v1276
      %v1339 = vpop.f32.mrf.mxu0
      %v1340 = vadd.f32 0.0, %v1339
      %v1341 = vpop.f32.mrf.mxu0
      %v1342 = vpop.f32.mrf.mxu0
      %v1343 = vadd.f32 0.0, %v1342
      %v1344 = vpop.f32.mrf.mxu0
      %1345 = vmatprep.mubr.bf16.mxu0 0
      %1346 = vmatmul.mubr.bf16.gmra.mxu0 %v1279
      %v1347 = vpop.f32.mrf.mxu0
      %v1348 = vadd.f32 0.0, %v1347
      %v1349 = vpop.f32.mrf.mxu0
      %v1350 = vpop.f32.mrf.mxu0
      %v1351 = vadd.f32 0.0, %v1350
      %v1352 = vpop.f32.mrf.mxu0
      %1353 = vmatprep.mubr.bf16.mxu0 0
      %1354 = vmatmul.mubr.bf16.gmra.mxu0 %v1282
      %v1355 = vpop.f32.mrf.mxu0
      %v1356 = vadd.f32 0.0, %v1355
      %v1357 = vpop.f32.mrf.mxu0
      %v1358 = vpop.f32.mrf.mxu0
      %v1359 = vadd.f32 0.0, %v1358
      %v1360 = vpop.f32.mrf.mxu0
      %1361 = vmatprep.mubr.bf16.mxu0 0
      %1362 = vmatmul.mubr.bf16.gmra.mxu0 %v1285
      %v1363 = vpop.f32.mrf.mxu0
      %v1364 = vadd.f32 0.0, %v1363
      %v1365 = vpop.f32.mrf.mxu0
      %v1366 = vpop.f32.mrf.mxu0
      %v1367 = vadd.f32 0.0, %v1366
      %v1368 = vpop.f32.mrf.mxu0
      %1369 = vmatprep.mubr.bf16.mxu0 0
      %1370 = vmatmul.mubr.bf16.gmra.mxu0 %v1288
      %v1371 = vpop.f32.mrf.mxu0
      %v1372 = vadd.f32 0.0, %v1371
      %v1373 = vpop.f32.mrf.mxu0
      %v1374 = vpop.f32.mrf.mxu0
      %v1375 = vadd.f32 0.0, %v1374
      %v1376 = vpop.f32.mrf.mxu0
      %1377 = vmatprep.mubr.bf16.mxu0 0
      %1378 = vmatmul.mubr.bf16.gmra.mxu0 %v1291
      %v1379 = vpop.f32.mrf.mxu0
      %v1380 = vadd.f32 0.0, %v1379
      %v1381 = vpop.f32.mrf.mxu0
      %v1382 = vpop.f32.mrf.mxu0
      %v1383 = vadd.f32 0.0, %v1382
      %v1384 = vpop.f32.mrf.mxu0
      %1385 = vmatprep.mubr.bf16.mxu0 0
      %1386 = vmatmul.mubr.bf16.gmra.mxu0 %v1294
      %v1387 = vpop.f32.mrf.mxu0
      %v1388 = vadd.f32 0.0, %v1387
      %v1389 = vpop.f32.mrf.mxu0
      %v1390 = vpop.f32.mrf.mxu0
      %v1391 = vadd.f32 0.0, %v1390
      %v1392 = vpop.f32.mrf.mxu0
      %1393 = vmatprep.mubr.bf16.mxu0 0
      %1394 = vmatmul.mubr.bf16.gmra.mxu0 %v1297
      %v1395 = vpop.f32.mrf.mxu0
      %v1396 = vadd.f32 0.0, %v1395
      %v1397 = vpop.f32.mrf.mxu0
      %v1398 = vpop.f32.mrf.mxu0
      %v1399 = vadd.f32 0.0, %v1398
      %v1400 = vpop.f32.mrf.mxu0
      %1401 = vmatprep.mubr.bf16.mxu0 0
      %1402 = vmatmul.mubr.bf16.gmra.mxu0 %v1300
      %v1403 = vpop.f32.mrf.mxu0
      %v1404 = vadd.f32 0.0, %v1403
      %v1405 = vpop.f32.mrf.mxu0
      %v1406 = vpop.f32.mrf.mxu0
      %v1407 = vadd.f32 0.0, %v1406
      %v1408 = vpop.f32.mrf.mxu0
      %1409 = vmatprep.mubr.bf16.mxu0 0
      %1410 = vmatmul.mubr.bf16.gmra.mxu0 %v1303
      %v1411 = vpop.f32.mrf.mxu0
      %v1412 = vadd.f32 0.0, %v1411
      %v1413 = vpop.f32.mrf.mxu0
      %v1414 = vpop.f32.mrf.mxu0
      %v1415 = vadd.f32 0.0, %v1414
      %v1416 = vpop.f32.mrf.mxu0
      %1417 = vdwg.mxu0
      %v1418 = vmul.f32 %v1340, %v1340
      %v1419 = vmul.f32 %v1343, %v1343
      %v1420 = vmul.f32 %v1348, %v1348
      %v1421 = vmul.f32 %v1351, %v1351
      %v1422 = vmul.f32 %v1340, %v1348
      %v1423 = vmul.f32 %v1343, %v1351
      %v1424 = vsub.f32 %v1356, %v1418
      %v1425 = vsub.f32 %v1359, %v1419
      %v1426 = vsub.f32 %v1364, %v1420
      %v1427 = vsub.f32 %v1367, %v1421
      %v1428 = vsub.f32 %v1372, %v1422
      %v1429 = vsub.f32 %v1375, %v1423
      %v1430 = vmul.f32 %v1428, 2.0
      %v1431 = vmul.f32 %v1429, 2.0
      %v1432 = vadd.f32 %v1430, 0.0009
      %v1433 = vadd.f32 %v1431, 0.0009
      %v1434 = vadd.f32 %v1424, %v1426
      %v1435 = vadd.f32 %v1425, %v1427
      %v1436 = vadd.f32 %v1434, 0.0009
      %v1437 = vadd.f32 %v1435, 0.0009
      %v1438 = vrcp.pop %v1436
      %v1439 = vrcp.pop %v1437
      %v1440 = vmul.f32 %v1432, %v1438
      %v1441 = vmul.f32 %v1433, %v1439
      %v1442 = vmul.f32 %v1106, %v1440
      %v1443 = vmul.f32 %v1107, %v1441
      %v1444 = vmul.f32 %v1380, %v1380
      %v1445 = vmul.f32 %v1383, %v1383
      %v1446 = vmul.f32 %v1388, %v1388
      %v1447 = vmul.f32 %v1391, %v1391
      %v1448 = vmul.f32 %v1380, %v1388
      %v1449 = vmul.f32 %v1383, %v1391
      %v1450 = vsub.f32 %v1396, %v1444
      %v1451 = vsub.f32 %v1399, %v1445
      %v1452 = vsub.f32 %v1404, %v1446
      %v1453 = vsub.f32 %v1407, %v1447
      %v1454 = vsub.f32 %v1412, %v1448
      %v1455 = vsub.f32 %v1415, %v1449
      %v1456 = vmul.f32 %v1454, 2.0
      %v1457 = vmul.f32 %v1455, 2.0
      %v1458 = vadd.f32 %v1456, 0.0009
      %v1459 = vadd.f32 %v1457, 0.0009
      %v1460 = vadd.f32 %v1450, %v1452
      %v1461 = vadd.f32 %v1451, %v1453
      %v1462 = vadd.f32 %v1460, 0.0009
      %v1463 = vadd.f32 %v1461, 0.0009
      %v1464 = vrcp.pop %v1462
      %v1465 = vrcp.pop %v1463
      %v1466 = vmul.f32 %v1458, %v1464
      %v1467 = vmul.f32 %v1459, %v1465
      %v1468 = vmul.f32 %v1466, %v1466
      %v1469 = vmul.f32 %v1467, %v1467
      %v1470 = vmul.f32 %v1442, %v1468
      %v1471 = vmul.f32 %v1443, %v1469
      %v1472 = vsub.f32 %v215, %v221
      %v1473 = vsub.f32 %v216, %v222
      %v1474 = vand.u32 2147483647, %v1472
      %v1475 = vand.u32 2147483647, %v1473
      %v1476 = vsub.f32 %v217, %v223
      %v1477 = vsub.f32 %v218, %v224
      %v1478 = vand.u32 2147483647, %v1476
      %v1479 = vand.u32 2147483647, %v1477
      %v1480 = vsub.f32 %v219, %v225
      %v1481 = vsub.f32 %v220, %v226
      %v1482 = vand.u32 2147483647, %v1480
      %v1483 = vand.u32 2147483647, %v1481
      %1484 = vrot.lane.b32.xlu0 %v225, 16
      %v1485 = vpop.permute.xlu0 %1484
      %1486 = vrot.lane.b32.xlu0 %v226, 16
      %v1487 = vpop.permute.xlu0 %1486
      %1490 = vrot.lane.b32.xlu0 %v231, 32
      %v1491 = vpop.permute.xlu0 %1490
      %1492 = vrot.lane.b32.xlu0 %v232, 32
      %v1493 = vpop.permute.xlu0 %1492
      %1498 = vrot.lane.b32.xlu0 %v237, 48
      %v1499 = vpop.permute.xlu0 %1498
      %1500 = vrot.lane.b32.xlu0 %v238, 48
      %v1501 = vpop.permute.xlu0 %1500
      %1504 = vrot.lane.b32.xlu0 %v243, 64
      %v1505 = vpop.permute.xlu0 %1504
      %1506 = vrot.lane.b32.xlu0 %v244, 64
      %v1507 = vpop.permute.xlu0 %1506
      %1512 = vrot.lane.b32.xlu0 %v1474, 80
      %v1513 = vpop.permute.xlu0 %1512
      %1514 = vrot.lane.b32.xlu0 %v1475, 80
      %v1515 = vpop.permute.xlu0 %1514
      %1520 = vrot.lane.b32.xlu0 %v1478, 96
      %v1521 = vpop.permute.xlu0 %1520
      %1522 = vrot.lane.b32.xlu0 %v1479, 96
      %v1523 = vpop.permute.xlu0 %1522
      %1528 = vrot.lane.b32.xlu0 %v1482, 112
      %v1529 = vpop.permute.xlu0 %1528
      %1530 = vrot.lane.b32.xlu0 %v1483, 112
      %v1531 = vpop.permute.xlu0 %1530
      %v1534 = vsel %vm277, %v219, %v1485
      %v1535 = vsel %vm277, %v220, %v1487
      %v1536 = vsel %vm280, %v1534, %v1491
      %v1537 = vsel %vm280, %v1535, %v1493
      %v1538 = vsel %vm283, %v1536, %v1499
      %v1539 = vsel %vm283, %v1537, %v1501
      %v1540 = vsel %vm286, %v1538, %v1505
      %v1541 = vsel %vm286, %v1539, %v1507
      %v1542 = vsel %vm528, %v1540, %v1513
      %v1543 = vsel %vm528, %v1541, %v1515
      %v1544 = vsel %vm531, %v1542, %v1521
      %v1545 = vsel %vm531, %v1543, %v1523
      %v1546 = vsel %vm534, %v1544, %v1529
      %v1547 = vsel %vm534, %v1545, %v1531
      %v1548 = vpack.c.bf16 %v1547, %v1546
      %s1549 = scalar_lea.vmem %s2, 32
      %v1550 = vld [vmem:[%s1549] sm:$0xf]
      %v1551 = vld [vmem:[%s1549 + $0x4] sm:$0xf]
      %v1554 = vunpack.c.l.b16 %v1550
      %v1555 = vunpack.c.l.b16 %v1551
      %v1556 = vpack.c.b16 %v1555, %v1554
      %v1558 = vsel %vm277, %v1556, 0
      %1560 = vmatprep.subr.bf16.mxu0 0
      %1561 = vmatpush1.bf16.msra.mxu0 0
      %1562 = vmatprep.subr.bf16.mxu0 0
      %1563 = vmatpush1.bf16.msra.mxu0 0
      %1564 = vmatprep.subr.bf16.mxu0 0
      %1565 = vmatpush1.bf16.msra.mxu0 0
      %1566 = vmatprep.subr.bf16.mxu0 0
      %1567 = vmatpush1.bf16.msra.mxu0 0
      %1568 = vmatprep.subr.bf16.mxu0 0
      %1569 = vmatpush1.bf16.msra.mxu0 0
      %1570 = vmatprep.subr.bf16.mxu0 0
      %1571 = vmatpush1.bf16.msra.mxu0 0
      %1572 = vmatprep.subr.bf16.mxu0 0
      %1573 = vmatpush1.bf16.msra.mxu0 0
      %1574 = vmatprep.subr.bf16.mxu0 0
      %1575 = vmatpush1.bf16.msra.mxu0 %v1548
      %1576 = vmatprep.subr.bf16.mxu0 0
      %1577 = vmatpush2.bf16.msra.mxu0 0
      %1578 = vmatprep.subr.bf16.mxu0 0
      %1579 = vmatpush2.bf16.msra.mxu0 0
      %1580 = vmatprep.subr.bf16.mxu0 0
      %1581 = vmatpush2.bf16.msra.mxu0 0
      %1582 = vmatprep.subr.bf16.mxu0 0
      %1583 = vmatpush2.bf16.msra.mxu0 0
      %1584 = vmatprep.subr.bf16.mxu0 0
      %1585 = vmatpush2.bf16.msra.mxu0 0
      %1586 = vmatprep.subr.bf16.mxu0 0
      %1587 = vmatpush2.bf16.msra.mxu0 0
      %1588 = vmatprep.subr.bf16.mxu0 0
      %1589 = vmatpush2.bf16.msra.mxu0 0
      %1590 = vmatprep.subr.bf16.mxu0 0
      %1591 = vmatpush2.bf16.msra.mxu0 0
      %1592 = vmatprep.mubr.bf16.mxu0 0
      %1593 = vmatmul.mubr.bf16.gmra.mxu0 %v1558
      %v1594 = vpop.f32.mrf.mxu0
      %v1595 = vadd.f32 0.0, %v1594
      %v1596 = vpop.f32.mrf.mxu0
      %v1597 = vpop.f32.mrf.mxu0
      %v1598 = vadd.f32 0.0, %v1597
      %v1599 = vpop.f32.mrf.mxu0
      %1600 = vdwg.mxu0
      %1603 = vrot.lane.b32.xlu0 %v1595, 112
      %v1604 = vpop.permute.xlu0 %1603
      %1605 = vrot.lane.b32.xlu0 %v1598, 112
      %v1606 = vpop.permute.xlu0 %1605
      %1609 = vrot.lane.b32.xlu0 %v1595, 96
      %v1610 = vpop.permute.xlu0 %1609
      %1611 = vrot.lane.b32.xlu0 %v1598, 96
      %v1612 = vpop.permute.xlu0 %1611
      %1615 = vrot.lane.b32.xlu0 %v1595, 80
      %v1616 = vpop.permute.xlu0 %1615
      %1617 = vrot.lane.b32.xlu0 %v1598, 80
      %v1618 = vpop.permute.xlu0 %1617
      %1621 = vrot.lane.b32.xlu0 %v1595, 64
      %v1622 = vpop.permute.xlu0 %1621
      %1623 = vrot.lane.b32.xlu0 %v1598, 64
      %v1624 = vpop.permute.xlu0 %1623
      %1627 = vrot.lane.b32.xlu0 %v1595, 48
      %v1628 = vpop.permute.xlu0 %1627
      %1629 = vrot.lane.b32.xlu0 %v1598, 48
      %v1630 = vpop.permute.xlu0 %1629
      %1633 = vrot.lane.b32.xlu0 %v1595, 32
      %v1634 = vpop.permute.xlu0 %1633
      %1635 = vrot.lane.b32.xlu0 %v1598, 32
      %v1636 = vpop.permute.xlu0 %1635
      %1639 = vrot.lane.b32.xlu0 %v1595, 16
      %v1640 = vpop.permute.xlu0 %1639
      %1641 = vrot.lane.b32.xlu0 %v1598, 16
      %v1642 = vpop.permute.xlu0 %1641
      %v1645 = vpack.c.bf16 %v1598, %v1595
      %v1646 = vpack.c.bf16 %v1606, %v1604
      %v1647 = vpack.c.bf16 %v1612, %v1610
      %v1648 = vpack.c.bf16 %v1618, %v1616
      %v1649 = vpack.c.bf16 %v1624, %v1622
      %v1650 = vpack.c.bf16 %v1630, %v1628
      %v1651 = vpack.c.bf16 %v1636, %v1634
      %v1652 = vpack.c.bf16 %v1642, %v1640
      %s1653 = scalar_lea.vmem %s3, 32
      %v1654 = vld [vmem:[%s1653] sm:$0xf]
      %v1655 = vld [vmem:[%s1653 + $0x4] sm:$0xf]
      %v1658 = vunpack.c.l.b16 %v1654
      %v1659 = vunpack.c.l.b16 %v1655
      %v1660 = vpack.c.b16 %v1659, %v1658
      %v1663 = vsel %vm277, %v1645, 0
      %v1666 = vsel %vm277, %v1646, 0
      %v1669 = vsel %vm277, %v1647, 0
      %v1672 = vsel %vm277, %v1648, 0
      %v1675 = vsel %vm277, %v1649, 0
      %v1678 = vsel %vm277, %v1650, 0
      %v1681 = vsel %vm277, %v1651, 0
      %v1684 = vsel %vm277, %v1652, 0
      %1686 = vmatprep.subr.bf16.mxu0 0
      %1687 = vmatpush1.bf16.msra.mxu0 0
      %1688 = vmatprep.subr.bf16.mxu0 0
      %1689 = vmatpush1.bf16.msra.mxu0 0
      %1690 = vmatprep.subr.bf16.mxu0 0
      %1691 = vmatpush1.bf16.msra.mxu0 0
      %1692 = vmatprep.subr.bf16.mxu0 0
      %1693 = vmatpush1.bf16.msra.mxu0 0
      %1694 = vmatprep.subr.bf16.mxu0 0
      %1695 = vmatpush1.bf16.msra.mxu0 0
      %1696 = vmatprep.subr.bf16.mxu0 0
      %1697 = vmatpush1.bf16.msra.mxu0 0
      %1698 = vmatprep.subr.bf16.mxu0 0
      %1699 = vmatpush1.bf16.msra.mxu0 0
      %1700 = vmatprep.subr.bf16.mxu0 0
      %1701 = vmatpush1.bf16.msra.mxu0 %v1660
      %1702 = vmatprep.subr.bf16.mxu0 0
      %1703 = vmatpush2.bf16.msra.mxu0 0
      %1704 = vmatprep.subr.bf16.mxu0 0
      %1705 = vmatpush2.bf16.msra.mxu0 0
      %1706 = vmatprep.subr.bf16.mxu0 0
      %1707 = vmatpush2.bf16.msra.mxu0 0
      %1708 = vmatprep.subr.bf16.mxu0 0
      %1709 = vmatpush2.bf16.msra.mxu0 0
      %1710 = vmatprep.subr.bf16.mxu0 0
      %1711 = vmatpush2.bf16.msra.mxu0 0
      %1712 = vmatprep.subr.bf16.mxu0 0
      %1713 = vmatpush2.bf16.msra.mxu0 0
      %1714 = vmatprep.subr.bf16.mxu0 0
      %1715 = vmatpush2.bf16.msra.mxu0 0
      %1716 = vmatprep.subr.bf16.mxu0 0
      %1717 = vmatpush2.bf16.msra.mxu0 0
      %1718 = vmatprep.mubr.bf16.mxu0 0
      %1719 = vmatmul.mubr.bf16.gmra.mxu0 %v1663
      %v1720 = vpop.f32.mrf.mxu0
      %v1721 = vadd.f32 0.0, %v1720
      %v1722 = vpop.f32.mrf.mxu0
      %v1723 = vpop.f32.mrf.mxu0
      %v1724 = vadd.f32 0.0, %v1723
      %v1725 = vpop.f32.mrf.mxu0
      %1726 = vmatprep.mubr.bf16.mxu0 0
      %1727 = vmatmul.mubr.bf16.gmra.mxu0 %v1666
      %v1728 = vpop.f32.mrf.mxu0
      %v1729 = vadd.f32 0.0, %v1728
      %v1730 = vpop.f32.mrf.mxu0
      %v1731 = vpop.f32.mrf.mxu0
      %v1732 = vadd.f32 0.0, %v1731
      %v1733 = vpop.f32.mrf.mxu0
      %1734 = vmatprep.mubr.bf16.mxu0 0
      %1735 = vmatmul.mubr.bf16.gmra.mxu0 %v1669
      %v1736 = vpop.f32.mrf.mxu0
      %v1737 = vadd.f32 0.0, %v1736
      %v1738 = vpop.f32.mrf.mxu0
      %v1739 = vpop.f32.mrf.mxu0
      %v1740 = vadd.f32 0.0, %v1739
      %v1741 = vpop.f32.mrf.mxu0
      %1742 = vmatprep.mubr.bf16.mxu0 0
      %1743 = vmatmul.mubr.bf16.gmra.mxu0 %v1672
      %v1744 = vpop.f32.mrf.mxu0
      %v1745 = vadd.f32 0.0, %v1744
      %v1746 = vpop.f32.mrf.mxu0
      %v1747 = vpop.f32.mrf.mxu0
      %v1748 = vadd.f32 0.0, %v1747
      %v1749 = vpop.f32.mrf.mxu0
      %1750 = vmatprep.mubr.bf16.mxu0 0
      %1751 = vmatmul.mubr.bf16.gmra.mxu0 %v1675
      %v1752 = vpop.f32.mrf.mxu0
      %v1753 = vadd.f32 0.0, %v1752
      %v1754 = vpop.f32.mrf.mxu0
      %v1755 = vpop.f32.mrf.mxu0
      %v1756 = vadd.f32 0.0, %v1755
      %v1757 = vpop.f32.mrf.mxu0
      %1758 = vmatprep.mubr.bf16.mxu0 0
      %1759 = vmatmul.mubr.bf16.gmra.mxu0 %v1678
      %v1760 = vpop.f32.mrf.mxu0
      %v1761 = vadd.f32 0.0, %v1760
      %v1762 = vpop.f32.mrf.mxu0
      %v1763 = vpop.f32.mrf.mxu0
      %v1764 = vadd.f32 0.0, %v1763
      %v1765 = vpop.f32.mrf.mxu0
      %1766 = vmatprep.mubr.bf16.mxu0 0
      %1767 = vmatmul.mubr.bf16.gmra.mxu0 %v1681
      %v1768 = vpop.f32.mrf.mxu0
      %v1769 = vadd.f32 0.0, %v1768
      %v1770 = vpop.f32.mrf.mxu0
      %v1771 = vpop.f32.mrf.mxu0
      %v1772 = vadd.f32 0.0, %v1771
      %v1773 = vpop.f32.mrf.mxu0
      %1774 = vmatprep.mubr.bf16.mxu0 0
      %1775 = vmatmul.mubr.bf16.gmra.mxu0 %v1684
      %v1776 = vpop.f32.mrf.mxu0
      %v1777 = vadd.f32 0.0, %v1776
      %v1778 = vpop.f32.mrf.mxu0
      %v1779 = vpop.f32.mrf.mxu0
      %v1780 = vadd.f32 0.0, %v1779
      %v1781 = vpop.f32.mrf.mxu0
      %1782 = vdwg.mxu0
      %v1783 = vmul.f32 %v1721, %v1721
      %v1784 = vmul.f32 %v1724, %v1724
      %v1785 = vmul.f32 %v1729, %v1729
      %v1786 = vmul.f32 %v1732, %v1732
      %v1787 = vmul.f32 %v1721, %v1729
      %v1788 = vmul.f32 %v1724, %v1732
      %v1789 = vsub.f32 %v1737, %v1783
      %v1790 = vsub.f32 %v1740, %v1784
      %v1791 = vsub.f32 %v1745, %v1785
      %v1792 = vsub.f32 %v1748, %v1786
      %v1793 = vsub.f32 %v1753, %v1787
      %v1794 = vsub.f32 %v1756, %v1788
      %v1795 = vmul.f32 %v1793, 2.0
      %v1796 = vmul.f32 %v1794, 2.0
      %v1797 = vadd.f32 %v1795, 0.0009
      %v1798 = vadd.f32 %v1796, 0.0009
      %v1799 = vadd.f32 %v1789, %v1791
      %v1800 = vadd.f32 %v1790, %v1792
      %v1801 = vadd.f32 %v1799, 0.0009
      %v1802 = vadd.f32 %v1800, 0.0009
      %v1803 = vrcp.pop %v1801
      %v1804 = vrcp.pop %v1802
      %v1805 = vmul.f32 %v1797, %v1803
      %v1806 = vmul.f32 %v1798, %v1804
      %v1807 = vmul.f32 %v1805, %v1805
      %v1808 = vmul.f32 %v1806, %v1806
      %v1809 = vmul.f32 %v1807, %v1805
      %v1810 = vmul.f32 %v1808, %v1806
      %v1811 = vmul.f32 %v1470, %v1809
      %v1812 = vmul.f32 %v1471, %v1810
      %v1813 = vmul.f32 %v1787, 2.0
      %v1814 = vmul.f32 %v1788, 2.0
      %v1815 = vadd.f32 %v1813, 0.0001
      %v1816 = vadd.f32 %v1814, 0.0001
      %v1817 = vadd.f32 %v1783, %v1785
      %v1818 = vadd.f32 %v1784, %v1786
      %v1819 = vadd.f32 %v1817, 0.0001
      %v1820 = vadd.f32 %v1818, 0.0001
      %v1821 = vrcp.pop %v1819
      %v1822 = vrcp.pop %v1820
      %v1823 = vmul.f32 %v1815, %v1821
      %v1824 = vmul.f32 %v1816, %v1822
      %v1825 = vmul.f32 %v1823, %v1823
      %v1826 = vmul.f32 %v1824, %v1824
      %v1827 = vmul.f32 %v1825, %v1823
      %v1828 = vmul.f32 %v1826, %v1824
      %v1829 = vadd.f32 %v1761, %v1769
      %v1830 = vadd.f32 %v1764, %v1772
      %v1831 = vadd.f32 %v1829, %v1777
      %v1832 = vadd.f32 %v1830, %v1780
      %v1833 = vmul.f32 %v1831, 0.33333334
      %v1834 = vmul.f32 %v1832, 0.33333334
      %v1835 = vmul.f32 %v1827, %v1811
      %v1836 = vmul.f32 %v1828, %v1812
      %v1837 = vsub.f32 1.0, %v1835
      %v1838 = vsub.f32 1.0, %v1836
      %v1839 = vmul.f32 %v1837, 0.025
      %v1840 = vmul.f32 %v1838, 0.025
      %v1841 = vmul.f32 %v1833, 0.975
      %v1842 = vmul.f32 %v1834, 0.975
      %v1843 = vadd.f32 %v1839, %v1841
      %v1844 = vadd.f32 %v1840, %v1842
      %v1845 = vsel %vm277, %v1843, 0.0
      %1846 = vadd.xlane.f32.xlu0 %v1845
      %v1847 = vpop.xlane.xlu0 %1846
      %v1848 = vsel %vm277, %v1844, 0.0
      %1849 = vadd.xlane.f32.xlu0 %v1848
      %v1850 = vpop.xlane.xlu0 %1849
      %v1851 = vadd.f32 %v1847, %v1850
      %v1852 = vrot.slane %v1851, 4
      %v1853 = vadd.f32 %v1851, %v1852
      %v1854 = vrot.slane %v1853, 2
      %v1855 = vadd.f32 %v1853, %v1854
      %v1856 = vrot.slane %v1855, 1
      %v1857 = vadd.f32 %v1855, %v1856
      %v1858 = vmul.f32 %v1857, 200.0
      %vm1859 = vcmask 0
      %1860 = vst.msk [vmem:[%s213] sm:$0x1] %vm1859, %v1858
      %p1861 = scmp.lt.s32.totalorder %s15, 1
      %s1862 = scalar_select %p1861, %s15, 1
      %s1863 = scalar_lea.vmem %s4, %s1862
      // Predicated region
      $region37: #{ms_ssim_l1_loss.1} parent=35 // pred_check
        %p1864 = pneg %p127
      $region38: #{ms_ssim_l1_loss.1} parent=35 // pred_check_branch
        %1866 = sbr.rel (%p1864) target = $region40
      $region39: #{ms_ssim_l1_loss.1} parent=35 // pred_region
        _
      $region40: #{ms_ssim_l1_loss.1} parent=35 // pred_fallthru
        _
    $region36: #{ms_ssim_l1_loss.1} parent=5 // pred_fallthru
      _
    %p1867 = scmp.le.s32.totalorder 2, %s10
    // Predicated region
    $region41: #{ms_ssim_l1_loss.1} parent=5 // pred_check
      %p1868 = pneg %p1867
    $region42: #{ms_ssim_l1_loss.1} parent=5 // pred_check_branch
      %1870 = sbr.rel (%p1868) target = $region44
    $region43: #{ms_ssim_l1_loss.1} parent=5 // pred_region
      %s1871 = ssub.s32 %s10, 2
      // Predicated region
      $region45: #{ms_ssim_l1_loss.1} parent=43 // pred_check
        %p1872 = pneg %p133
      $region46: #{ms_ssim_l1_loss.1} parent=43 // pred_check_branch
        %1874 = sbr.rel (%p1872) target = $region48
      $region47: #{ms_ssim_l1_loss.1} parent=43 // pred_region
        %p1875 = scmp.lt.s32.totalorder %s16, 1
        %s1876 = scalar_select %p1875, %s16, 1
        %s1877 = scalar_lea.vmem %s4, %s1876
      $region48: #{ms_ssim_l1_loss.1} parent=43 // pred_fallthru
        _
    $region44: #{ms_ssim_l1_loss.1} parent=5 // pred_fallthru
      _
  $region6: #{ms_ssim_l1_loss.1} parent=0 // loop_footer
    %s14 = sadd.s32 1, %s10
  $region7: #{ms_ssim_l1_loss.1} parent=0 // loop_footer_branch
    %9 = sbr.rel target = $region3
  $region8: #{ms_ssim_l1_loss.1} parent=0 // loop_exit
    _

</llo_original>
